<compile_context>
chip_gen: v5e
topology: v5e:2x2
jax: 0.10.0
libtpu: 0.0.40
codegen_flags: <defaults>
</compile_context>

<pallas_src>
import jax
import jax.numpy as jnp
from jax.experimental import pallas as pl
from jax.experimental.pallas import tpu as pltpu

HIDDEN = 32      # nn module default is 100; small lane-aligned hidden for the demo.
                 # For the real hidden=100, pad H -> 128 so 4H/8H stay lane aligned.
BATCH = 2
FEAT = 6
SEQ = 8          # forward() iterates exactly 8 timesteps


# ---- packed-parameter slab layout: (PACK_ROWS, 8*HIDDEN) f32, 8-aligned offsets ----
def _align8(n):
    return (n + 7) // 8 * 8


ROW_W1 = 0                       # rows [0:FEAT),  cols [0:H)    : linear1.weight^T
ROW_WIH0 = _align8(FEAT)         # rows [8:40),    cols [0:4H)   : lstm weight_ih_l0^T
ROW_WTOP = ROW_WIH0 + HIDDEN     # rows [40:72),   cols [0:8H)   : [whh0 | wih1] fused RHS
ROW_WHH1 = ROW_WTOP + HIDDEN     # rows [72:104),  cols [0:4H)   : lstm weight_hh_l1^T
ROW_W4 = ROW_WHH1 + HIDDEN       # rows [104:136), cols [0:FEAT) : linear4.weight^T
ROW_B = ROW_W4 + HIDDEN          # rows [136:144)                : b1, b0, bl1, b4
PACK_ROWS = ROW_B + 8            # 144
PACK_COLS = 8 * HIDDEN           # 256


def imu_gps_kernel(x_ref, w_ref, out_ref, h1_scr):
    # x_ref  : (SEQ, B, FEAT) f32  -- time on the sublane-major axis
    # w_ref  : (PACK_ROWS, 8H) f32 -- all parameters packed into one slab (one DMA)
    # out_ref: (SEQ, B, FEAT) f32  -- full de-normalized outputs, written once
    # h1_scr : (SEQ*B, H) f32 VMEM scratch for per-step h1 (feeds batched linear4)
    x = x_ref[...]
    S, B, F = x.shape
    H = HIDDEN

    # ---- statistics over the time axis (hoisted, computed once) ----
    mean_v = jnp.mean(x, axis=0)                            # (B, F)
    diff = x - mean_v[None, :, :]
    var_v = jnp.sum(diff * diff, axis=0) / (S - 1)          # unbiased (torch.std)
    inv_std = jax.lax.rsqrt(var_v)                          # one EUP transcendental
    std_v = var_v * inv_std                                 # = sqrt(var)
    # TODO(synk): PyTorch reference also divides by std with no epsilon; a
    # constant feature over the window would produce inf/NaN in both.

    # ---- static views into the packed weight slab (single HBM->VMEM DMA) ----
    w1 = w_ref[ROW_W1:ROW_W1 + F, 0:H]                      # (F, H)
    wih0 = w_ref[ROW_WIH0:ROW_WIH0 + H, 0:4 * H]            # (H, 4H)
    wtop = w_ref[ROW_WTOP:ROW_WTOP + H, :]                  # (H, 8H) = [whh0 | wih1]
    whh1 = w_ref[ROW_WHH1:ROW_WHH1 + H, 0:4 * H]            # (H, 4H)
    w4 = w_ref[ROW_W4:ROW_W4 + H, 0:F]                      # (H, F)
    bias_blk = w_ref[ROW_B:ROW_B + 8, :]                    # aligned (8, 8H) tile
    b1 = bias_blk[0:1, 0:H]                                 # (1, H)
    b0 = bias_blk[1:2, 0:4 * H]                             # (1, 4H) ih+hh bias, layer 0
    bl1 = bias_blk[2:3, 0:4 * H]                            # (1, 4H) ih+hh bias, layer 1
    b4 = bias_blk[3:4, 0:F]                                 # (1, F)

    # hoisted broadcast (JAX does not CSE broadcast_in_dim across the unrolled loop)
    bl1_b = jnp.broadcast_to(bl1, (B, 4 * H))

    # ---- batched non-recurrent work over all timesteps ----
    xn = (diff * inv_std[None, :, :]).reshape(S * B, F)     # (S*B, F)
    z = jnp.dot(xn, w1, preferred_element_type=jnp.float32) + b1      # linear1
    z = jnp.maximum(z, 0.2 * z)                             # LeakyReLU(0.2)
    ih0 = (jnp.dot(z, wih0, preferred_element_type=jnp.float32) + b0
           ).reshape(S, B, 4 * H)                           # layer-0 ih term, all steps

    h0 = jnp.zeros((B, H), jnp.float32)
    c0 = jnp.zeros((B, H), jnp.float32)
    h1 = jnp.zeros((B, H), jnp.float32)
    c1 = jnp.zeros((B, H), jnp.float32)
    rec0 = None                    # layer-0 recurrent term h0(t-1) @ whh0

    for t in range(S):             # fixed trip count -> unrolled at trace time
        # layer-1 hh term: depends only on previous-step h1 -> off the critical path
        if t == 0:
            rec1 = None
        else:
            rec1 = jnp.dot(h1, whh1, preferred_element_type=jnp.float32)

        # ---- LSTM layer 0 ----
        if t == 0:
            g0 = ih0[t]                                     # initial h0 = 0
        else:
            g0 = ih0[t] + rec0
        s0 = jax.nn.sigmoid(g0)        # one EUP push on the full (B, 4H) gates
        t0 = jnp.tanh(g0[:, 2 * H:3 * H])
        c0 = s0[:, H:2 * H] * c0 + s0[:, 0:H] * t0
        h0 = s0[:, 3 * H:4 * H] * jnp.tanh(c0)

        # ---- wavefront matmul: layer-1 ih term (t) AND layer-0 hh term (t+1) ----
        fused = jnp.dot(h0, wtop, preferred_element_type=jnp.float32)  # (B, 8H)
        rec0 = fused[:, 0:4 * H]                            # h0(t) @ whh0, used at t+1
        if t == 0:
            g1 = fused[:, 4 * H:8 * H] + bl1_b              # initial h1 = 0
        else:
            g1 = fused[:, 4 * H:8 * H] + rec1 + bl1_b
        s1 = jax.nn.sigmoid(g1)
        t1 = jnp.tanh(g1[:, 2 * H:3 * H])
        c1 = s1[:, H:2 * H] * c1 + s1[:, 0:H] * t1
        h1 = s1[:, 3 * H:4 * H] * jnp.tanh(c1)

        h1_scr[t * B:(t + 1) * B, :] = h1                   # static-slice scratch store

    # ---- batched epilogue: linear4 + de-normalization, single store ----
    h1_all = h1_scr[...]                                    # (S*B, H), row = t*B + b
    out2d = jnp.dot(h1_all, w4, preferred_element_type=jnp.float32) + b4
    out3d = out2d.reshape(S, B, F)
    out_ref[...] = out3d * std_v[None, :, :] + mean_v[None, :, :]


def init_params(key, hidden_dim=HIDDEN):
    """Deterministic synthetic parameters (PyTorch-style uniform init, pre-transposed)."""
    H = hidden_dim
    ks = jax.random.split(key, 12)

    def u(k, shape, fan_in):
        bound = 1.0 / jnp.sqrt(jnp.float32(fan_in))
        return jax.random.uniform(k, shape, jnp.float32, -bound, bound)

    return dict(
        w1=u(ks[0], (FEAT, H), FEAT),          # linear1.weight^T  (6, H)
        b1=u(ks[1], (1, H), FEAT),             # linear1.bias
        wih0=u(ks[2], (H, 4 * H), H),          # lstm weight_ih_l0^T
        whh0=u(ks[3], (H, 4 * H), H),          # lstm weight_hh_l0^T
        b0=u(ks[4], (1, 4 * H), H) + u(ks[5], (1, 4 * H), H),   # bias_ih_l0 + bias_hh_l0
        wih1=u(ks[6], (H, 4 * H), H),          # lstm weight_ih_l1^T
        whh1=u(ks[7], (H, 4 * H), H),          # lstm weight_hh_l1^T
        bl1=u(ks[8], (1, 4 * H), H) + u(ks[9], (1, 4 * H), H),  # bias_ih_l1 + bias_hh_l1
        w4=u(ks[10], (H, FEAT), H),            # linear4.weight^T  (H, 6)
        b4=u(ks[11], (1, FEAT), H),            # linear4.bias
    )


def pack_params(params):
    """Pack all parameters into one (PACK_ROWS, 8H) f32 slab (single kernel input / DMA)."""
    H = HIDDEN
    slab = jnp.zeros((PACK_ROWS, PACK_COLS), jnp.float32)
    slab = slab.at[ROW_W1:ROW_W1 + FEAT, 0:H].set(params["w1"])
    slab = slab.at[ROW_WIH0:ROW_WIH0 + H, 0:4 * H].set(params["wih0"])
    wtop = jnp.concatenate([params["whh0"], params["wih1"]], axis=1)   # (H, 8H)
    slab = slab.at[ROW_WTOP:ROW_WTOP + H, :].set(wtop)
    slab = slab.at[ROW_WHH1:ROW_WHH1 + H, 0:4 * H].set(params["whh1"])
    slab = slab.at[ROW_W4:ROW_W4 + H, 0:FEAT].set(params["w4"])
    slab = slab.at[ROW_B + 0:ROW_B + 1, 0:H].set(params["b1"])
    slab = slab.at[ROW_B + 1:ROW_B + 2, 0:4 * H].set(params["b0"])
    slab = slab.at[ROW_B + 2:ROW_B + 3, 0:4 * H].set(params["bl1"])
    slab = slab.at[ROW_B + 3:ROW_B + 4, 0:FEAT].set(params["b4"])
    return slab


@jax.jit
def imu_gps_forward(x, slab):
    """x: (B, 6, SEQ) like the PyTorch module. Returns (out_last, out_full)."""
    B = x.shape[0]
    x_t = jnp.transpose(x, (2, 0, 1))                      # (SEQ, B, FEAT): time sublane-major
    vmem = pl.BlockSpec(memory_space=pltpu.MemorySpace.VMEM)
    out_sbf = pl.pallas_call(
        imu_gps_kernel,
        out_shape=jax.ShapeDtypeStruct((SEQ, B, FEAT), jnp.float32),
        in_specs=[vmem, vmem],
        out_specs=vmem,
        scratch_shapes=[pltpu.VMEM((SEQ * B, HIDDEN), jnp.float32)],
    )(x_t, slab)
    out_full = jnp.transpose(out_sbf, (1, 2, 0))           # (B, 6, SEQ)
    out_last = out_full[:, :, SEQ - 1:SEQ]                 # (B, 6, 1) sliced in the wrapper
    return out_last, out_full


def reference_forward(x, params):
    """Pure-JAX replica of the PyTorch forward, for validation."""
    B = x.shape[0]
    H = params["w1"].shape[1]
    mean_v = jnp.mean(x, axis=2)
    std_v = jnp.sqrt(jnp.sum((x - mean_v[:, :, None]) ** 2, axis=2) / (SEQ - 1))

    def cell(inp, h, c, wih, whh, b):
        g = inp @ wih + h @ whh + b
        i_g = jax.nn.sigmoid(g[:, 0:H]); f_g = jax.nn.sigmoid(g[:, H:2 * H])
        g_g = jnp.tanh(g[:, 2 * H:3 * H]); o_g = jax.nn.sigmoid(g[:, 3 * H:4 * H])
        c_n = f_g * c + i_g * g_g
        return o_g * jnp.tanh(c_n), c_n

    h0 = c0 = h1 = c1 = jnp.zeros((B, H), jnp.float32)
    full = []
    res = None
    for i in range(SEQ):
        inp = (x[:, :, i] - mean_v) / std_v
        z = inp @ params["w1"] + params["b1"]
        z = jnp.where(z >= 0, z, 0.2 * z)
        h0, c0 = cell(z, h0, c0, params["wih0"], params["whh0"], params["b0"])
        h1, c1 = cell(h0, h1, c1, params["wih1"], params["whh1"], params["bl1"])
        out_t = h1 @ params["w4"] + params["b4"]
        res = out_t * std_v + mean_v
        full.append(res)
    return res[:, :, None], jnp.stack(full, axis=2)


if __name__ == "__main__":
    key = jax.random.PRNGKey(0)
    kx, kp = jax.random.split(key)
    x = jax.random.normal(kx, (BATCH, FEAT, SEQ), jnp.float32)
    params = init_params(kp)
    slab = pack_params(params)

    out_last, out_full = imu_gps_forward(x, slab)
    jax.block_until_ready((out_last, out_full))

    ref_last, ref_full = reference_forward(x, params)
    assert out_last.shape == (BATCH, FEAT, 1)
    assert out_full.shape == (BATCH, FEAT, SEQ)
    assert jnp.allclose(out_last, ref_last, rtol=1e-3, atol=1e-3)
    assert jnp.allclose(out_full, ref_full, rtol=1e-3, atol=1e-3)

    print("KERNEL_OK")
</pallas_src>

<mosaic_0001>
module attributes {stable_mosaic.version = 11 : i64} {
  func.func @imu_gps_kernel(%arg0: memref<8x2x6xf32, #tpu.memory_space<vmem>>, %arg1: memref<144x256xf32, #tpu.memory_space<vmem>>, %arg2: memref<8x2x6xf32, #tpu.memory_space<vmem>>, %arg3: memref<16x32xf32, #tpu.memory_space<vmem>>) attributes {dimension_semantics = [], scalar_prefetch = 0 : i64, scratch_operands = 1 : i64, tpu.core_type = #tpu.core_type<tc>} {
    %c0 = arith.constant 0 : index
    %c0_0 = arith.constant 0 : index
    %c0_1 = arith.constant 0 : index
    %0 = vector.load %arg0[%c0, %c0_0, %c0_1] : memref<8x2x6xf32, #tpu.memory_space<vmem>>, vector<8x2x6xf32>
    %cst = arith.constant dense<0.000000e+00> : vector<2x6xf32>
    %1 = vector.multi_reduction <add>, %0, %cst [0] : vector<8x2x6xf32> to vector<2x6xf32>
    %cst_2 = arith.constant 8.000000e+00 : f32
    %2 = vector.broadcast %cst_2 : f32 to vector<2x6xf32>
    %3 = arith.divf %1, %2 : vector<2x6xf32>
    %4 = vector.shape_cast %3 : vector<2x6xf32> to vector<1x2x6xf32>
    %5 = vector.broadcast %4 : vector<1x2x6xf32> to vector<8x2x6xf32>
    %6 = arith.subf %0, %5 : vector<8x2x6xf32>
    %7 = arith.mulf %6, %6 : vector<8x2x6xf32>
    %cst_3 = arith.constant dense<0.000000e+00> : vector<2x6xf32>
    %8 = vector.multi_reduction <add>, %7, %cst_3 [0] : vector<8x2x6xf32> to vector<2x6xf32>
    %cst_4 = arith.constant 7.000000e+00 : f32
    %9 = vector.broadcast %cst_4 : f32 to vector<2x6xf32>
    %10 = arith.divf %8, %9 : vector<2x6xf32>
    %11 = math.rsqrt %10 : vector<2x6xf32>
    %12 = arith.mulf %10, %11 : vector<2x6xf32>
    %c0_5 = arith.constant 0 : index
    %c0_6 = arith.constant 0 : index
    %13 = vector.load %arg1[%c0_5, %c0_6] : memref<144x256xf32, #tpu.memory_space<vmem>>, vector<6x32xf32>
    %c8 = arith.constant 8 : index
    %c0_7 = arith.constant 0 : index
    %14 = vector.load %arg1[%c8, %c0_7] : memref<144x256xf32, #tpu.memory_space<vmem>>, vector<32x128xf32>
    %c40 = arith.constant 40 : index
    %c0_8 = arith.constant 0 : index
    %15 = vector.load %arg1[%c40, %c0_8] : memref<144x256xf32, #tpu.memory_space<vmem>>, vector<32x256xf32>
    %c72 = arith.constant 72 : index
    %c0_9 = arith.constant 0 : index
    %16 = vector.load %arg1[%c72, %c0_9] : memref<144x256xf32, #tpu.memory_space<vmem>>, vector<32x128xf32>
    %c104 = arith.constant 104 : index
    %c0_10 = arith.constant 0 : index
    %17 = vector.load %arg1[%c104, %c0_10] : memref<144x256xf32, #tpu.memory_space<vmem>>, vector<32x6xf32>
    %c136 = arith.constant 136 : index
    %c0_11 = arith.constant 0 : index
    %18 = vector.load %arg1[%c136, %c0_11] : memref<144x256xf32, #tpu.memory_space<vmem>>, vector<8x256xf32>
    %19 = vector.extract_strided_slice %18 {offsets = [0, 0], sizes = [1, 32], strides = [1, 1]} : vector<8x256xf32> to vector<1x32xf32>
    %20 = vector.extract_strided_slice %18 {offsets = [1, 0], sizes = [1, 128], strides = [1, 1]} : vector<8x256xf32> to vector<1x128xf32>
    %21 = vector.extract_strided_slice %18 {offsets = [2, 0], sizes = [1, 128], strides = [1, 1]} : vector<8x256xf32> to vector<1x128xf32>
    %22 = vector.extract_strided_slice %18 {offsets = [3, 0], sizes = [1, 6], strides = [1, 1]} : vector<8x256xf32> to vector<1x6xf32>
    %23 = vector.shape_cast %21 : vector<1x128xf32> to vector<1x128xf32>
    %24 = vector.broadcast %23 : vector<1x128xf32> to vector<2x128xf32>
    %25 = vector.shape_cast %11 : vector<2x6xf32> to vector<1x2x6xf32>
    %26 = vector.broadcast %25 : vector<1x2x6xf32> to vector<8x2x6xf32>
    %27 = arith.mulf %6, %26 : vector<8x2x6xf32>
    %28 = vector.shape_cast %27 : vector<8x2x6xf32> to vector<16x6xf32>
    %cst_12 = arith.constant dense<0.000000e+00> : vector<16x32xf32>
    %29 = tpu.matmul %28, %13, %cst_12 {dimension_numbers = #tpu.dot_dimension_numbers<[1], [0], [0], [1], [0, 0, 1, 1], [], []>} : vector<16x6xf32>, vector<6x32xf32>, vector<16x32xf32> -> vector<16x32xf32>
    %30 = vector.broadcast %19 : vector<1x32xf32> to vector<16x32xf32>
    %31 = arith.addf %29, %30 : vector<16x32xf32>
    %cst_13 = arith.constant 2.000000e-01 : f32
    %32 = vector.broadcast %cst_13 : f32 to vector<16x32xf32>
    %33 = arith.mulf %32, %31 : vector<16x32xf32>
    %34 = arith.maximumf %31, %33 : vector<16x32xf32>
    %cst_14 = arith.constant dense<0.000000e+00> : vector<16x128xf32>
    %35 = tpu.matmul %34, %14, %cst_14 {dimension_numbers = #tpu.dot_dimension_numbers<[1], [0], [0], [1], [0, 0, 1, 1], [], []>} : vector<16x32xf32>, vector<32x128xf32>, vector<16x128xf32> -> vector<16x128xf32>
    %36 = vector.broadcast %20 : vector<1x128xf32> to vector<16x128xf32>
    %37 = arith.addf %35, %36 : vector<16x128xf32>
    %38 = vector.shape_cast %37 : vector<16x128xf32> to vector<8x2x128xf32>
    %cst_15 = arith.constant 0.000000e+00 : f32
    %39 = vector.broadcast %cst_15 : f32 to vector<2x32xf32>
    %cst_16 = arith.constant 0.000000e+00 : f32
    %40 = vector.broadcast %cst_16 : f32 to vector<2x32xf32>
    %41 = vector.extract_strided_slice %38 {offsets = [0, 0, 0], sizes = [1, 2, 128], strides = [1, 1, 1]} : vector<8x2x128xf32> to vector<1x2x128xf32>
    %42 = vector.shape_cast %41 : vector<1x2x128xf32> to vector<2x128xf32>
    %43 = arith.negf %42 : vector<2x128xf32>
    %44 = math.exp %43 : vector<2x128xf32>
    %cst_17 = arith.constant 1.000000e+00 : f32
    %45 = vector.broadcast %cst_17 : f32 to vector<2x128xf32>
    %46 = arith.addf %45, %44 : vector<2x128xf32>
    %47 = arith.divf %45, %46 : vector<2x128xf32>
    %48 = vector.extract_strided_slice %42 {offsets = [0, 64], sizes = [2, 32], strides = [1, 1]} : vector<2x128xf32> to vector<2x32xf32>
    %49 = math.tanh %48 : vector<2x32xf32>
    %50 = vector.extract_strided_slice %47 {offsets = [0, 32], sizes = [2, 32], strides = [1, 1]} : vector<2x128xf32> to vector<2x32xf32>
    %51 = arith.mulf %50, %39 : vector<2x32xf32>
    %52 = vector.extract_strided_slice %47 {offsets = [0, 0], sizes = [2, 32], strides = [1, 1]} : vector<2x128xf32> to vector<2x32xf32>
    %53 = arith.mulf %52, %49 : vector<2x32xf32>
    %54 = arith.addf %51, %53 : vector<2x32xf32>
    %55 = vector.extract_strided_slice %47 {offsets = [0, 96], sizes = [2, 32], strides = [1, 1]} : vector<2x128xf32> to vector<2x32xf32>
    %56 = math.tanh %54 : vector<2x32xf32>
    %57 = arith.mulf %55, %56 : vector<2x32xf32>
    %cst_18 = arith.constant dense<0.000000e+00> : vector<2x256xf32>
    %58 = tpu.matmul %57, %15, %cst_18 {dimension_numbers = #tpu.dot_dimension_numbers<[1], [0], [0], [1], [0, 0, 1, 1], [], []>} : vector<2x32xf32>, vector<32x256xf32>, vector<2x256xf32> -> vector<2x256xf32>
    %59 = vector.extract_strided_slice %58 {offsets = [0, 0], sizes = [2, 128], strides = [1, 1]} : vector<2x256xf32> to vector<2x128xf32>
    %60 = vector.extract_strided_slice %58 {offsets = [0, 128], sizes = [2, 128], strides = [1, 1]} : vector<2x256xf32> to vector<2x128xf32>
    %61 = arith.addf %60, %24 : vector<2x128xf32>
    %62 = arith.negf %61 : vector<2x128xf32>
    %63 = math.exp %62 : vector<2x128xf32>
    %cst_19 = arith.constant 1.000000e+00 : f32
    %64 = vector.broadcast %cst_19 : f32 to vector<2x128xf32>
    %65 = arith.addf %64, %63 : vector<2x128xf32>
    %66 = arith.divf %64, %65 : vector<2x128xf32>
    %67 = vector.extract_strided_slice %61 {offsets = [0, 64], sizes = [2, 32], strides = [1, 1]} : vector<2x128xf32> to vector<2x32xf32>
    %68 = math.tanh %67 : vector<2x32xf32>
    %69 = vector.extract_strided_slice %66 {offsets = [0, 32], sizes = [2, 32], strides = [1, 1]} : vector<2x128xf32> to vector<2x32xf32>
    %70 = arith.mulf %69, %40 : vector<2x32xf32>
    %71 = vector.extract_strided_slice %66 {offsets = [0, 0], sizes = [2, 32], strides = [1, 1]} : vector<2x128xf32> to vector<2x32xf32>
    %72 = arith.mulf %71, %68 : vector<2x32xf32>
    %73 = arith.addf %70, %72 : vector<2x32xf32>
    %74 = vector.extract_strided_slice %66 {offsets = [0, 96], sizes = [2, 32], strides = [1, 1]} : vector<2x128xf32> to vector<2x32xf32>
    %75 = math.tanh %73 : vector<2x32xf32>
    %76 = arith.mulf %74, %75 : vector<2x32xf32>
    %c0_20 = arith.constant 0 : index
    %c0_21 = arith.constant 0 : index
    %77 = vector.load %arg3[%c0_20, %c0_21] : memref<16x32xf32, #tpu.memory_space<vmem>>, vector<2x32xf32>
    tpu.vector_store %arg3[%c0_20, %c0_21], %76 {strides = array<i32>} : memref<16x32xf32, #tpu.memory_space<vmem>>, vector<2x32xf32>,
    %cst_22 = arith.constant dense<0.000000e+00> : vector<2x128xf32>
    %78 = tpu.matmul %76, %16, %cst_22 {dimension_numbers = #tpu.dot_dimension_numbers<[1], [0], [0], [1], [0, 0, 1, 1], [], []>} : vector<2x32xf32>, vector<32x128xf32>, vector<2x128xf32> -> vector<2x128xf32>
    %79 = vector.extract_strided_slice %38 {offsets = [1, 0, 0], sizes = [1, 2, 128], strides = [1, 1, 1]} : vector<8x2x128xf32> to vector<1x2x128xf32>
    %80 = vector.shape_cast %79 : vector<1x2x128xf32> to vector<2x128xf32>
    %81 = arith.addf %80, %59 : vector<2x128xf32>
    %82 = arith.negf %81 : vector<2x128xf32>
    %83 = math.exp %82 : vector<2x128xf32>
    %cst_23 = arith.constant 1.000000e+00 : f32
    %84 = vector.broadcast %cst_23 : f32 to vector<2x128xf32>
    %85 = arith.addf %84, %83 : vector<2x128xf32>
    %86 = arith.divf %84, %85 : vector<2x128xf32>
    %87 = vector.extract_strided_slice %81 {offsets = [0, 64], sizes = [2, 32], strides = [1, 1]} : vector<2x128xf32> to vector<2x32xf32>
    %88 = math.tanh %87 : vector<2x32xf32>
    %89 = vector.extract_strided_slice %86 {offsets = [0, 32], sizes = [2, 32], strides = [1, 1]} : vector<2x128xf32> to vector<2x32xf32>
    %90 = arith.mulf %89, %54 : vector<2x32xf32>
    %91 = vector.extract_strided_slice %86 {offsets = [0, 0], sizes = [2, 32], strides = [1, 1]} : vector<2x128xf32> to vector<2x32xf32>
    %92 = arith.mulf %91, %88 : vector<2x32xf32>
    %93 = arith.addf %90, %92 : vector<2x32xf32>
    %94 = vector.extract_strided_slice %86 {offsets = [0, 96], sizes = [2, 32], strides = [1, 1]} : vector<2x128xf32> to vector<2x32xf32>
    %95 = math.tanh %93 : vector<2x32xf32>
    %96 = arith.mulf %94, %95 : vector<2x32xf32>
    %cst_24 = arith.constant dense<0.000000e+00> : vector<2x256xf32>
    %97 = tpu.matmul %96, %15, %cst_24 {dimension_numbers = #tpu.dot_dimension_numbers<[1], [0], [0], [1], [0, 0, 1, 1], [], []>} : vector<2x32xf32>, vector<32x256xf32>, vector<2x256xf32> -> vector<2x256xf32>
    %98 = vector.extract_strided_slice %97 {offsets = [0, 0], sizes = [2, 128], strides = [1, 1]} : vector<2x256xf32> to vector<2x128xf32>
    %99 = vector.extract_strided_slice %97 {offsets = [0, 128], sizes = [2, 128], strides = [1, 1]} : vector<2x256xf32> to vector<2x128xf32>
    %100 = arith.addf %99, %78 : vector<2x128xf32>
    %101 = arith.addf %100, %24 : vector<2x128xf32>
    %102 = arith.negf %101 : vector<2x128xf32>
    %103 = math.exp %102 : vector<2x128xf32>
    %cst_25 = arith.constant 1.000000e+00 : f32
    %104 = vector.broadcast %cst_25 : f32 to vector<2x128xf32>
    %105 = arith.addf %104, %103 : vector<2x128xf32>
    %106 = arith.divf %104, %105 : vector<2x128xf32>
    %107 = vector.extract_strided_slice %101 {offsets = [0, 64], sizes = [2, 32], strides = [1, 1]} : vector<2x128xf32> to vector<2x32xf32>
    %108 = math.tanh %107 : vector<2x32xf32>
    %109 = vector.extract_strided_slice %106 {offsets = [0, 32], sizes = [2, 32], strides = [1, 1]} : vector<2x128xf32> to vector<2x32xf32>
    %110 = arith.mulf %109, %73 : vector<2x32xf32>
    %111 = vector.extract_strided_slice %106 {offsets = [0, 0], sizes = [2, 32], strides = [1, 1]} : vector<2x128xf32> to vector<2x32xf32>
    %112 = arith.mulf %111, %108 : vector<2x32xf32>
    %113 = arith.addf %110, %112 : vector<2x32xf32>
    %114 = vector.extract_strided_slice %106 {offsets = [0, 96], sizes = [2, 32], strides = [1, 1]} : vector<2x128xf32> to vector<2x32xf32>
    %115 = math.tanh %113 : vector<2x32xf32>
    %116 = arith.mulf %114, %115 : vector<2x32xf32>
    %c2 = arith.constant 2 : index
    %c0_26 = arith.constant 0 : index
    %117 = vector.load %arg3[%c2, %c0_26] : memref<16x32xf32, #tpu.memory_space<vmem>>, vector<2x32xf32>
    tpu.vector_store %arg3[%c2, %c0_26], %116 {strides = array<i32>} : memref<16x32xf32, #tpu.memory_space<vmem>>, vector<2x32xf32>,
    %cst_27 = arith.constant dense<0.000000e+00> : vector<2x128xf32>
    %118 = tpu.matmul %116, %16, %cst_27 {dimension_numbers = #tpu.dot_dimension_numbers<[1], [0], [0], [1], [0, 0, 1, 1], [], []>} : vector<2x32xf32>, vector<32x128xf32>, vector<2x128xf32> -> vector<2x128xf32>
    %119 = vector.extract_strided_slice %38 {offsets = [2, 0, 0], sizes = [1, 2, 128], strides = [1, 1, 1]} : vector<8x2x128xf32> to vector<1x2x128xf32>
    %120 = vector.shape_cast %119 : vector<1x2x128xf32> to vector<2x128xf32>
    %121 = arith.addf %120, %98 : vector<2x128xf32>
    %122 = arith.negf %121 : vector<2x128xf32>
    %123 = math.exp %122 : vector<2x128xf32>
    %cst_28 = arith.constant 1.000000e+00 : f32
    %124 = vector.broadcast %cst_28 : f32 to vector<2x128xf32>
    %125 = arith.addf %124, %123 : vector<2x128xf32>
    %126 = arith.divf %124, %125 : vector<2x128xf32>
    %127 = vector.extract_strided_slice %121 {offsets = [0, 64], sizes = [2, 32], strides = [1, 1]} : vector<2x128xf32> to vector<2x32xf32>
    %128 = math.tanh %127 : vector<2x32xf32>
    %129 = vector.extract_strided_slice %126 {offsets = [0, 32], sizes = [2, 32], strides = [1, 1]} : vector<2x128xf32> to vector<2x32xf32>
    %130 = arith.mulf %129, %93 : vector<2x32xf32>
    %131 = vector.extract_strided_slice %126 {offsets = [0, 0], sizes = [2, 32], strides = [1, 1]} : vector<2x128xf32> to vector<2x32xf32>
    %132 = arith.mulf %131, %128 : vector<2x32xf32>
    %133 = arith.addf %130, %132 : vector<2x32xf32>
    %134 = vector.extract_strided_slice %126 {offsets = [0, 96], sizes = [2, 32], strides = [1, 1]} : vector<2x128xf32> to vector<2x32xf32>
    %135 = math.tanh %133 : vector<2x32xf32>
    %136 = arith.mulf %134, %135 : vector<2x32xf32>
    %cst_29 = arith.constant dense<0.000000e+00> : vector<2x256xf32>
    %137 = tpu.matmul %136, %15, %cst_29 {dimension_numbers = #tpu.dot_dimension_numbers<[1], [0], [0], [1], [0, 0, 1, 1], [], []>} : vector<2x32xf32>, vector<32x256xf32>, vector<2x256xf32> -> vector<2x256xf32>
    %138 = vector.extract_strided_slice %137 {offsets = [0, 0], sizes = [2, 128], strides = [1, 1]} : vector<2x256xf32> to vector<2x128xf32>
    %139 = vector.extract_strided_slice %137 {offsets = [0, 128], sizes = [2, 128], strides = [1, 1]} : vector<2x256xf32> to vector<2x128xf32>
    %140 = arith.addf %139, %118 : vector<2x128xf32>
    %141 = arith.addf %140, %24 : vector<2x128xf32>
    %142 = arith.negf %141 : vector<2x128xf32>
    %143 = math.exp %142 : vector<2x128xf32>
    %cst_30 = arith.constant 1.000000e+00 : f32
    %144 = vector.broadcast %cst_30 : f32 to vector<2x128xf32>
    %145 = arith.addf %144, %143 : vector<2x128xf32>
    %146 = arith.divf %144, %145 : vector<2x128xf32>
    %147 = vector.extract_strided_slice %141 {offsets = [0, 64], sizes = [2, 32], strides = [1, 1]} : vector<2x128xf32> to vector<2x32xf32>
    %148 = math.tanh %147 : vector<2x32xf32>
    %149 = vector.extract_strided_slice %146 {offsets = [0, 32], sizes = [2, 32], strides = [1, 1]} : vector<2x128xf32> to vector<2x32xf32>
    %150 = arith.mulf %149, %113 : vector<2x32xf32>
    %151 = vector.extract_strided_slice %146 {offsets = [0, 0], sizes = [2, 32], strides = [1, 1]} : vector<2x128xf32> to vector<2x32xf32>
    %152 = arith.mulf %151, %148 : vector<2x32xf32>
    %153 = arith.addf %150, %152 : vector<2x32xf32>
    %154 = vector.extract_strided_slice %146 {offsets = [0, 96], sizes = [2, 32], strides = [1, 1]} : vector<2x128xf32> to vector<2x32xf32>
    %155 = math.tanh %153 : vector<2x32xf32>
    %156 = arith.mulf %154, %155 : vector<2x32xf32>
    %c4 = arith.constant 4 : index
    %c0_31 = arith.constant 0 : index
    %157 = vector.load %arg3[%c4, %c0_31] : memref<16x32xf32, #tpu.memory_space<vmem>>, vector<2x32xf32>
    tpu.vector_store %arg3[%c4, %c0_31], %156 {strides = array<i32>} : memref<16x32xf32, #tpu.memory_space<vmem>>, vector<2x32xf32>,
    %cst_32 = arith.constant dense<0.000000e+00> : vector<2x128xf32>
    %158 = tpu.matmul %156, %16, %cst_32 {dimension_numbers = #tpu.dot_dimension_numbers<[1], [0], [0], [1], [0, 0, 1, 1], [], []>} : vector<2x32xf32>, vector<32x128xf32>, vector<2x128xf32> -> vector<2x128xf32>
    %159 = vector.extract_strided_slice %38 {offsets = [3, 0, 0], sizes = [1, 2, 128], strides = [1, 1, 1]} : vector<8x2x128xf32> to vector<1x2x128xf32>
    %160 = vector.shape_cast %159 : vector<1x2x128xf32> to vector<2x128xf32>
    %161 = arith.addf %160, %138 : vector<2x128xf32>
    %162 = arith.negf %161 : vector<2x128xf32>
    %163 = math.exp %162 : vector<2x128xf32>
    %cst_33 = arith.constant 1.000000e+00 : f32
    %164 = vector.broadcast %cst_33 : f32 to vector<2x128xf32>
    %165 = arith.addf %164, %163 : vector<2x128xf32>
    %166 = arith.divf %164, %165 : vector<2x128xf32>
    %167 = vector.extract_strided_slice %161 {offsets = [0, 64], sizes = [2, 32], strides = [1, 1]} : vector<2x128xf32> to vector<2x32xf32>
    %168 = math.tanh %167 : vector<2x32xf32>
    %169 = vector.extract_strided_slice %166 {offsets = [0, 32], sizes = [2, 32], strides = [1, 1]} : vector<2x128xf32> to vector<2x32xf32>
    %170 = arith.mulf %169, %133 : vector<2x32xf32>
    %171 = vector.extract_strided_slice %166 {offsets = [0, 0], sizes = [2, 32], strides = [1, 1]} : vector<2x128xf32> to vector<2x32xf32>
    %172 = arith.mulf %171, %168 : vector<2x32xf32>
    %173 = arith.addf %170, %172 : vector<2x32xf32>
    %174 = vector.extract_strided_slice %166 {offsets = [0, 96], sizes = [2, 32], strides = [1, 1]} : vector<2x128xf32> to vector<2x32xf32>
    %175 = math.tanh %173 : vector<2x32xf32>
    %176 = arith.mulf %174, %175 : vector<2x32xf32>
    %cst_34 = arith.constant dense<0.000000e+00> : vector<2x256xf32>
    %177 = tpu.matmul %176, %15, %cst_34 {dimension_numbers = #tpu.dot_dimension_numbers<[1], [0], [0], [1], [0, 0, 1, 1], [], []>} : vector<2x32xf32>, vector<32x256xf32>, vector<2x256xf32> -> vector<2x256xf32>
    %178 = vector.extract_strided_slice %177 {offsets = [0, 0], sizes = [2, 128], strides = [1, 1]} : vector<2x256xf32> to vector<2x128xf32>
    %179 = vector.extract_strided_slice %177 {offsets = [0, 128], sizes = [2, 128], strides = [1, 1]} : vector<2x256xf32> to vector<2x128xf32>
    %180 = arith.addf %179, %158 : vector<2x128xf32>
    %181 = arith.addf %180, %24 : vector<2x128xf32>
    %182 = arith.negf %181 : vector<2x128xf32>
    %183 = math.exp %182 : vector<2x128xf32>
    %cst_35 = arith.constant 1.000000e+00 : f32
    %184 = vector.broadcast %cst_35 : f32 to vector<2x128xf32>
    %185 = arith.addf %184, %183 : vector<2x128xf32>
    %186 = arith.divf %184, %185 : vector<2x128xf32>
    %187 = vector.extract_strided_slice %181 {offsets = [0, 64], sizes = [2, 32], strides = [1, 1]} : vector<2x128xf32> to vector<2x32xf32>
    %188 = math.tanh %187 : vector<2x32xf32>
    %189 = vector.extract_strided_slice %186 {offsets = [0, 32], sizes = [2, 32], strides = [1, 1]} : vector<2x128xf32> to vector<2x32xf32>
    %190 = arith.mulf %189, %153 : vector<2x32xf32>
    %191 = vector.extract_strided_slice %186 {offsets = [0, 0], sizes = [2, 32], strides = [1, 1]} : vector<2x128xf32> to vector<2x32xf32>
    %192 = arith.mulf %191, %188 : vector<2x32xf32>
    %193 = arith.addf %190, %192 : vector<2x32xf32>
    %194 = vector.extract_strided_slice %186 {offsets = [0, 96], sizes = [2, 32], strides = [1, 1]} : vector<2x128xf32> to vector<2x32xf32>
    %195 = math.tanh %193 : vector<2x32xf32>
    %196 = arith.mulf %194, %195 : vector<2x32xf32>
    %c6 = arith.constant 6 : index
    %c0_36 = arith.constant 0 : index
    %197 = vector.load %arg3[%c6, %c0_36] : memref<16x32xf32, #tpu.memory_space<vmem>>, vector<2x32xf32>
    tpu.vector_store %arg3[%c6, %c0_36], %196 {strides = array<i32>} : memref<16x32xf32, #tpu.memory_space<vmem>>, vector<2x32xf32>,
    %cst_37 = arith.constant dense<0.000000e+00> : vector<2x128xf32>
    %198 = tpu.matmul %196, %16, %cst_37 {dimension_numbers = #tpu.dot_dimension_numbers<[1], [0], [0], [1], [0, 0, 1, 1], [], []>} : vector<2x32xf32>, vector<32x128xf32>, vector<2x128xf32> -> vector<2x128xf32>
    %199 = vector.extract_strided_slice %38 {offsets = [4, 0, 0], sizes = [1, 2, 128], strides = [1, 1, 1]} : vector<8x2x128xf32> to vector<1x2x128xf32>
    %200 = vector.shape_cast %199 : vector<1x2x128xf32> to vector<2x128xf32>
    %201 = arith.addf %200, %178 : vector<2x128xf32>
    %202 = arith.negf %201 : vector<2x128xf32>
    %203 = math.exp %202 : vector<2x128xf32>
    %cst_38 = arith.constant 1.000000e+00 : f32
    %204 = vector.broadcast %cst_38 : f32 to vector<2x128xf32>
    %205 = arith.addf %204, %203 : vector<2x128xf32>
    %206 = arith.divf %204, %205 : vector<2x128xf32>
    %207 = vector.extract_strided_slice %201 {offsets = [0, 64], sizes = [2, 32], strides = [1, 1]} : vector<2x128xf32> to vector<2x32xf32>
    %208 = math.tanh %207 : vector<2x32xf32>
    %209 = vector.extract_strided_slice %206 {offsets = [0, 32], sizes = [2, 32], strides = [1, 1]} : vector<2x128xf32> to vector<2x32xf32>
    %210 = arith.mulf %209, %173 : vector<2x32xf32>
    %211 = vector.extract_strided_slice %206 {offsets = [0, 0], sizes = [2, 32], strides = [1, 1]} : vector<2x128xf32> to vector<2x32xf32>
    %212 = arith.mulf %211, %208 : vector<2x32xf32>
    %213 = arith.addf %210, %212 : vector<2x32xf32>
    %214 = vector.extract_strided_slice %206 {offsets = [0, 96], sizes = [2, 32], strides = [1, 1]} : vector<2x128xf32> to vector<2x32xf32>
    %215 = math.tanh %213 : vector<2x32xf32>
    %216 = arith.mulf %214, %215 : vector<2x32xf32>
    %cst_39 = arith.constant dense<0.000000e+00> : vector<2x256xf32>
    %217 = tpu.matmul %216, %15, %cst_39 {dimension_numbers = #tpu.dot_dimension_numbers<[1], [0], [0], [1], [0, 0, 1, 1], [], []>} : vector<2x32xf32>, vector<32x256xf32>, vector<2x256xf32> -> vector<2x256xf32>
    %218 = vector.extract_strided_slice %217 {offsets = [0, 0], sizes = [2, 128], strides = [1, 1]} : vector<2x256xf32> to vector<2x128xf32>
    %219 = vector.extract_strided_slice %217 {offsets = [0, 128], sizes = [2, 128], strides = [1, 1]} : vector<2x256xf32> to vector<2x128xf32>
    %220 = arith.addf %219, %198 : vector<2x128xf32>
    %221 = arith.addf %220, %24 : vector<2x128xf32>
    %222 = arith.negf %221 : vector<2x128xf32>
    %223 = math.exp %222 : vector<2x128xf32>
    %cst_40 = arith.constant 1.000000e+00 : f32
    %224 = vector.broadcast %cst_40 : f32 to vector<2x128xf32>
    %225 = arith.addf %224, %223 : vector<2x128xf32>
    %226 = arith.divf %224, %225 : vector<2x128xf32>
    %227 = vector.extract_strided_slice %221 {offsets = [0, 64], sizes = [2, 32], strides = [1, 1]} : vector<2x128xf32> to vector<2x32xf32>
    %228 = math.tanh %227 : vector<2x32xf32>
    %229 = vector.extract_strided_slice %226 {offsets = [0, 32], sizes = [2, 32], strides = [1, 1]} : vector<2x128xf32> to vector<2x32xf32>
    %230 = arith.mulf %229, %193 : vector<2x32xf32>
    %231 = vector.extract_strided_slice %226 {offsets = [0, 0], sizes = [2, 32], strides = [1, 1]} : vector<2x128xf32> to vector<2x32xf32>
    %232 = arith.mulf %231, %228 : vector<2x32xf32>
    %233 = arith.addf %230, %232 : vector<2x32xf32>
    %234 = vector.extract_strided_slice %226 {offsets = [0, 96], sizes = [2, 32], strides = [1, 1]} : vector<2x128xf32> to vector<2x32xf32>
    %235 = math.tanh %233 : vector<2x32xf32>
    %236 = arith.mulf %234, %235 : vector<2x32xf32>
    %c8_41 = arith.constant 8 : index
    %c0_42 = arith.constant 0 : index
    %237 = vector.load %arg3[%c8_41, %c0_42] : memref<16x32xf32, #tpu.memory_space<vmem>>, vector<2x32xf32>
    tpu.vector_store %arg3[%c8_41, %c0_42], %236 {strides = array<i32>} : memref<16x32xf32, #tpu.memory_space<vmem>>, vector<2x32xf32>,
    %cst_43 = arith.constant dense<0.000000e+00> : vector<2x128xf32>
    %238 = tpu.matmul %236, %16, %cst_43 {dimension_numbers = #tpu.dot_dimension_numbers<[1], [0], [0], [1], [0, 0, 1, 1], [], []>} : vector<2x32xf32>, vector<32x128xf32>, vector<2x128xf32> -> vector<2x128xf32>
    %239 = vector.extract_strided_slice %38 {offsets = [5, 0, 0], sizes = [1, 2, 128], strides = [1, 1, 1]} : vector<8x2x128xf32> to vector<1x2x128xf32>
    %240 = vector.shape_cast %239 : vector<1x2x128xf32> to vector<2x128xf32>
    %241 = arith.addf %240, %218 : vector<2x128xf32>
    %242 = arith.negf %241 : vector<2x128xf32>
    %243 = math.exp %242 : vector<2x128xf32>
    %cst_44 = arith.constant 1.000000e+00 : f32
    %244 = vector.broadcast %cst_44 : f32 to vector<2x128xf32>
    %245 = arith.addf %244, %243 : vector<2x128xf32>
    %246 = arith.divf %244, %245 : vector<2x128xf32>
    %247 = vector.extract_strided_slice %241 {offsets = [0, 64], sizes = [2, 32], strides = [1, 1]} : vector<2x128xf32> to vector<2x32xf32>
    %248 = math.tanh %247 : vector<2x32xf32>
    %249 = vector.extract_strided_slice %246 {offsets = [0, 32], sizes = [2, 32], strides = [1, 1]} : vector<2x128xf32> to vector<2x32xf32>
    %250 = arith.mulf %249, %213 : vector<2x32xf32>
    %251 = vector.extract_strided_slice %246 {offsets = [0, 0], sizes = [2, 32], strides = [1, 1]} : vector<2x128xf32> to vector<2x32xf32>
    %252 = arith.mulf %251, %248 : vector<2x32xf32>
    %253 = arith.addf %250, %252 : vector<2x32xf32>
    %254 = vector.extract_strided_slice %246 {offsets = [0, 96], sizes = [2, 32], strides = [1, 1]} : vector<2x128xf32> to vector<2x32xf32>
    %255 = math.tanh %253 : vector<2x32xf32>
    %256 = arith.mulf %254, %255 : vector<2x32xf32>
    %cst_45 = arith.constant dense<0.000000e+00> : vector<2x256xf32>
    %257 = tpu.matmul %256, %15, %cst_45 {dimension_numbers = #tpu.dot_dimension_numbers<[1], [0], [0], [1], [0, 0, 1, 1], [], []>} : vector<2x32xf32>, vector<32x256xf32>, vector<2x256xf32> -> vector<2x256xf32>
    %258 = vector.extract_strided_slice %257 {offsets = [0, 0], sizes = [2, 128], strides = [1, 1]} : vector<2x256xf32> to vector<2x128xf32>
    %259 = vector.extract_strided_slice %257 {offsets = [0, 128], sizes = [2, 128], strides = [1, 1]} : vector<2x256xf32> to vector<2x128xf32>
    %260 = arith.addf %259, %238 : vector<2x128xf32>
    %261 = arith.addf %260, %24 : vector<2x128xf32>
    %262 = arith.negf %261 : vector<2x128xf32>
    %263 = math.exp %262 : vector<2x128xf32>
    %cst_46 = arith.constant 1.000000e+00 : f32
    %264 = vector.broadcast %cst_46 : f32 to vector<2x128xf32>
    %265 = arith.addf %264, %263 : vector<2x128xf32>
    %266 = arith.divf %264, %265 : vector<2x128xf32>
    %267 = vector.extract_strided_slice %261 {offsets = [0, 64], sizes = [2, 32], strides = [1, 1]} : vector<2x128xf32> to vector<2x32xf32>
    %268 = math.tanh %267 : vector<2x32xf32>
    %269 = vector.extract_strided_slice %266 {offsets = [0, 32], sizes = [2, 32], strides = [1, 1]} : vector<2x128xf32> to vector<2x32xf32>
    %270 = arith.mulf %269, %233 : vector<2x32xf32>
    %271 = vector.extract_strided_slice %266 {offsets = [0, 0], sizes = [2, 32], strides = [1, 1]} : vector<2x128xf32> to vector<2x32xf32>
    %272 = arith.mulf %271, %268 : vector<2x32xf32>
    %273 = arith.addf %270, %272 : vector<2x32xf32>
    %274 = vector.extract_strided_slice %266 {offsets = [0, 96], sizes = [2, 32], strides = [1, 1]} : vector<2x128xf32> to vector<2x32xf32>
    %275 = math.tanh %273 : vector<2x32xf32>
    %276 = arith.mulf %274, %275 : vector<2x32xf32>
    %c10 = arith.constant 10 : index
    %c0_47 = arith.constant 0 : index
    %277 = vector.load %arg3[%c10, %c0_47] : memref<16x32xf32, #tpu.memory_space<vmem>>, vector<2x32xf32>
    tpu.vector_store %arg3[%c10, %c0_47], %276 {strides = array<i32>} : memref<16x32xf32, #tpu.memory_space<vmem>>, vector<2x32xf32>,
    %cst_48 = arith.constant dense<0.000000e+00> : vector<2x128xf32>
    %278 = tpu.matmul %276, %16, %cst_48 {dimension_numbers = #tpu.dot_dimension_numbers<[1], [0], [0], [1], [0, 0, 1, 1], [], []>} : vector<2x32xf32>, vector<32x128xf32>, vector<2x128xf32> -> vector<2x128xf32>
    %279 = vector.extract_strided_slice %38 {offsets = [6, 0, 0], sizes = [1, 2, 128], strides = [1, 1, 1]} : vector<8x2x128xf32> to vector<1x2x128xf32>
    %280 = vector.shape_cast %279 : vector<1x2x128xf32> to vector<2x128xf32>
    %281 = arith.addf %280, %258 : vector<2x128xf32>
    %282 = arith.negf %281 : vector<2x128xf32>
    %283 = math.exp %282 : vector<2x128xf32>
    %cst_49 = arith.constant 1.000000e+00 : f32
    %284 = vector.broadcast %cst_49 : f32 to vector<2x128xf32>
    %285 = arith.addf %284, %283 : vector<2x128xf32>
    %286 = arith.divf %284, %285 : vector<2x128xf32>
    %287 = vector.extract_strided_slice %281 {offsets = [0, 64], sizes = [2, 32], strides = [1, 1]} : vector<2x128xf32> to vector<2x32xf32>
    %288 = math.tanh %287 : vector<2x32xf32>
    %289 = vector.extract_strided_slice %286 {offsets = [0, 32], sizes = [2, 32], strides = [1, 1]} : vector<2x128xf32> to vector<2x32xf32>
    %290 = arith.mulf %289, %253 : vector<2x32xf32>
    %291 = vector.extract_strided_slice %286 {offsets = [0, 0], sizes = [2, 32], strides = [1, 1]} : vector<2x128xf32> to vector<2x32xf32>
    %292 = arith.mulf %291, %288 : vector<2x32xf32>
    %293 = arith.addf %290, %292 : vector<2x32xf32>
    %294 = vector.extract_strided_slice %286 {offsets = [0, 96], sizes = [2, 32], strides = [1, 1]} : vector<2x128xf32> to vector<2x32xf32>
    %295 = math.tanh %293 : vector<2x32xf32>
    %296 = arith.mulf %294, %295 : vector<2x32xf32>
    %cst_50 = arith.constant dense<0.000000e+00> : vector<2x256xf32>
    %297 = tpu.matmul %296, %15, %cst_50 {dimension_numbers = #tpu.dot_dimension_numbers<[1], [0], [0], [1], [0, 0, 1, 1], [], []>} : vector<2x32xf32>, vector<32x256xf32>, vector<2x256xf32> -> vector<2x256xf32>
    %298 = vector.extract_strided_slice %297 {offsets = [0, 0], sizes = [2, 128], strides = [1, 1]} : vector<2x256xf32> to vector<2x128xf32>
    %299 = vector.extract_strided_slice %297 {offsets = [0, 128], sizes = [2, 128], strides = [1, 1]} : vector<2x256xf32> to vector<2x128xf32>
    %300 = arith.addf %299, %278 : vector<2x128xf32>
    %301 = arith.addf %300, %24 : vector<2x128xf32>
    %302 = arith.negf %301 : vector<2x128xf32>
    %303 = math.exp %302 : vector<2x128xf32>
    %cst_51 = arith.constant 1.000000e+00 : f32
    %304 = vector.broadcast %cst_51 : f32 to vector<2x128xf32>
    %305 = arith.addf %304, %303 : vector<2x128xf32>
    %306 = arith.divf %304, %305 : vector<2x128xf32>
    %307 = vector.extract_strided_slice %301 {offsets = [0, 64], sizes = [2, 32], strides = [1, 1]} : vector<2x128xf32> to vector<2x32xf32>
    %308 = math.tanh %307 : vector<2x32xf32>
    %309 = vector.extract_strided_slice %306 {offsets = [0, 32], sizes = [2, 32], strides = [1, 1]} : vector<2x128xf32> to vector<2x32xf32>
    %310 = arith.mulf %309, %273 : vector<2x32xf32>
    %311 = vector.extract_strided_slice %306 {offsets = [0, 0], sizes = [2, 32], strides = [1, 1]} : vector<2x128xf32> to vector<2x32xf32>
    %312 = arith.mulf %311, %308 : vector<2x32xf32>
    %313 = arith.addf %310, %312 : vector<2x32xf32>
    %314 = vector.extract_strided_slice %306 {offsets = [0, 96], sizes = [2, 32], strides = [1, 1]} : vector<2x128xf32> to vector<2x32xf32>
    %315 = math.tanh %313 : vector<2x32xf32>
    %316 = arith.mulf %314, %315 : vector<2x32xf32>
    %c12 = arith.constant 12 : index
    %c0_52 = arith.constant 0 : index
    %317 = vector.load %arg3[%c12, %c0_52] : memref<16x32xf32, #tpu.memory_space<vmem>>, vector<2x32xf32>
    tpu.vector_store %arg3[%c12, %c0_52], %316 {strides = array<i32>} : memref<16x32xf32, #tpu.memory_space<vmem>>, vector<2x32xf32>,
    %cst_53 = arith.constant dense<0.000000e+00> : vector<2x128xf32>
    %318 = tpu.matmul %316, %16, %cst_53 {dimension_numbers = #tpu.dot_dimension_numbers<[1], [0], [0], [1], [0, 0, 1, 1], [], []>} : vector<2x32xf32>, vector<32x128xf32>, vector<2x128xf32> -> vector<2x128xf32>
    %319 = vector.extract_strided_slice %38 {offsets = [7, 0, 0], sizes = [1, 2, 128], strides = [1, 1, 1]} : vector<8x2x128xf32> to vector<1x2x128xf32>
    %320 = vector.shape_cast %319 : vector<1x2x128xf32> to vector<2x128xf32>
    %321 = arith.addf %320, %298 : vector<2x128xf32>
    %322 = arith.negf %321 : vector<2x128xf32>
    %323 = math.exp %322 : vector<2x128xf32>
    %cst_54 = arith.constant 1.000000e+00 : f32
    %324 = vector.broadcast %cst_54 : f32 to vector<2x128xf32>
    %325 = arith.addf %324, %323 : vector<2x128xf32>
    %326 = arith.divf %324, %325 : vector<2x128xf32>
    %327 = vector.extract_strided_slice %321 {offsets = [0, 64], sizes = [2, 32], strides = [1, 1]} : vector<2x128xf32> to vector<2x32xf32>
    %328 = math.tanh %327 : vector<2x32xf32>
    %329 = vector.extract_strided_slice %326 {offsets = [0, 32], sizes = [2, 32], strides = [1, 1]} : vector<2x128xf32> to vector<2x32xf32>
    %330 = arith.mulf %329, %293 : vector<2x32xf32>
    %331 = vector.extract_strided_slice %326 {offsets = [0, 0], sizes = [2, 32], strides = [1, 1]} : vector<2x128xf32> to vector<2x32xf32>
    %332 = arith.mulf %331, %328 : vector<2x32xf32>
    %333 = arith.addf %330, %332 : vector<2x32xf32>
    %334 = vector.extract_strided_slice %326 {offsets = [0, 96], sizes = [2, 32], strides = [1, 1]} : vector<2x128xf32> to vector<2x32xf32>
    %335 = math.tanh %333 : vector<2x32xf32>
    %336 = arith.mulf %334, %335 : vector<2x32xf32>
    %cst_55 = arith.constant dense<0.000000e+00> : vector<2x256xf32>
    %337 = tpu.matmul %336, %15, %cst_55 {dimension_numbers = #tpu.dot_dimension_numbers<[1], [0], [0], [1], [0, 0, 1, 1], [], []>} : vector<2x32xf32>, vector<32x256xf32>, vector<2x256xf32> -> vector<2x256xf32>
    %338 = vector.extract_strided_slice %337 {offsets = [0, 128], sizes = [2, 128], strides = [1, 1]} : vector<2x256xf32> to vector<2x128xf32>
    %339 = arith.addf %338, %318 : vector<2x128xf32>
    %340 = arith.addf %339, %24 : vector<2x128xf32>
    %341 = arith.negf %340 : vector<2x128xf32>
    %342 = math.exp %341 : vector<2x128xf32>
    %cst_56 = arith.constant 1.000000e+00 : f32
    %343 = vector.broadcast %cst_56 : f32 to vector<2x128xf32>
    %344 = arith.addf %343, %342 : vector<2x128xf32>
    %345 = arith.divf %343, %344 : vector<2x128xf32>
    %346 = vector.extract_strided_slice %340 {offsets = [0, 64], sizes = [2, 32], strides = [1, 1]} : vector<2x128xf32> to vector<2x32xf32>
    %347 = math.tanh %346 : vector<2x32xf32>
    %348 = vector.extract_strided_slice %345 {offsets = [0, 32], sizes = [2, 32], strides = [1, 1]} : vector<2x128xf32> to vector<2x32xf32>
    %349 = arith.mulf %348, %313 : vector<2x32xf32>
    %350 = vector.extract_strided_slice %345 {offsets = [0, 0], sizes = [2, 32], strides = [1, 1]} : vector<2x128xf32> to vector<2x32xf32>
    %351 = arith.mulf %350, %347 : vector<2x32xf32>
    %352 = arith.addf %349, %351 : vector<2x32xf32>
    %353 = vector.extract_strided_slice %345 {offsets = [0, 96], sizes = [2, 32], strides = [1, 1]} : vector<2x128xf32> to vector<2x32xf32>
    %354 = math.tanh %352 : vector<2x32xf32>
    %355 = arith.mulf %353, %354 : vector<2x32xf32>
    %c14 = arith.constant 14 : index
    %c0_57 = arith.constant 0 : index
    %356 = vector.load %arg3[%c14, %c0_57] : memref<16x32xf32, #tpu.memory_space<vmem>>, vector<2x32xf32>
    tpu.vector_store %arg3[%c14, %c0_57], %355 {strides = array<i32>} : memref<16x32xf32, #tpu.memory_space<vmem>>, vector<2x32xf32>,
    %c0_58 = arith.constant 0 : index
    %c0_59 = arith.constant 0 : index
    %357 = vector.load %arg3[%c0_58, %c0_59] : memref<16x32xf32, #tpu.memory_space<vmem>>, vector<16x32xf32>
    %cst_60 = arith.constant dense<0.000000e+00> : vector<16x6xf32>
    %358 = tpu.matmul %357, %17, %cst_60 {dimension_numbers = #tpu.dot_dimension_numbers<[1], [0], [0], [1], [0, 0, 1, 1], [], []>} : vector<16x32xf32>, vector<32x6xf32>, vector<16x6xf32> -> vector<16x6xf32>
    %359 = vector.broadcast %22 : vector<1x6xf32> to vector<16x6xf32>
    %360 = arith.addf %358, %359 : vector<16x6xf32>
    %361 = vector.shape_cast %360 : vector<16x6xf32> to vector<8x2x6xf32>
    %362 = vector.shape_cast %12 : vector<2x6xf32> to vector<1x2x6xf32>
    %363 = vector.broadcast %362 : vector<1x2x6xf32> to vector<8x2x6xf32>
    %364 = arith.mulf %361, %363 : vector<8x2x6xf32>
    %365 = vector.shape_cast %3 : vector<2x6xf32> to vector<1x2x6xf32>
    %366 = vector.broadcast %365 : vector<1x2x6xf32> to vector<8x2x6xf32>
    %367 = arith.addf %364, %366 : vector<8x2x6xf32>
    %c0_61 = arith.constant 0 : index
    %c0_62 = arith.constant 0 : index
    %c0_63 = arith.constant 0 : index
    %368 = vector.load %arg2[%c0_61, %c0_62, %c0_63] : memref<8x2x6xf32, #tpu.memory_space<vmem>>, vector<8x2x6xf32>
    tpu.vector_store %arg2[%c0_61, %c0_62, %c0_63], %367 {strides = array<i32>} : memref<8x2x6xf32, #tpu.memory_space<vmem>>, vector<8x2x6xf32>,
    return
  }
}

</mosaic_0001>

<llo_original>
// kernel: imu_gps_forward.1
$region0: #{imu_gps_forward.1}
  #allocation0 [shape = 'u32[]', space=smem, size = 0x4, offset = 0x4, fixed_abs, tag = 'smem constant byte address 0x4 - core index']
  #allocation1 [shape = 'u32[72,128]{1,0:T(1,128)}', space=vmem, size = 0x9000, scoped, tag = 'internal scratch']
  #allocation2 [shape = 'f32[16,32]{1,0:T(8,128)}', space=vmem, size = 0x2000, scoped, tag = 'scratch operand']
  %s0 = inlined_call_operand.vmem [shape: f32[8,2,6], index: 0, kind: input, shape index: {}]
  %s1 = inlined_call_operand.hbm [shape: f32[144,256], index: 1, kind: input, shape index: {}]
  %s2 = inlined_call_operand.vmem [shape: f32[8,2,6], index: 2, kind: output, shape index: {}]
  %s3 = sld [smem:[#allocation0]]
  $region22: #{imu_gps_forward.1} parent=0
    _
  %s5 = ssub.s32 1, %s3
  %s6 = scalar_select 0, %s5, %s3
  $region1: #{imu_gps_forward.1} parent=0
    #allocation3 [shape = 'u8[147456]{0}', space=vmem, size = 0x24000, scoped, tag = 'input window, operand 1, single buffered']
    #allocation4 [shape = 's32[1]{0}', space=sflag, size = 0x4, scoped, tag = 'scoped memory for imu_gps_forward.1']
    %7 = vsyncpa [#allocation4], 0
    // Predicated region
    $region2: #{imu_gps_forward.1} parent=1 // pred_check
      _
    $region3: #{imu_gps_forward.1} parent=1 // pred_check_branch
      %9 = sbr.rel (0) target = $region5
    $region4: #{imu_gps_forward.1} parent=1 // pred_region
      _
    $region5: #{imu_gps_forward.1} parent=1 // pred_fallthru
      _
    // Predicated region
    $region6: #{imu_gps_forward.1} parent=1 // pred_check
      _
    $region7: #{imu_gps_forward.1} parent=1 // pred_check_branch
      %11 = sbr.rel (0) target = $region9
    $region8: #{imu_gps_forward.1} parent=1 // pred_region
      %13 = vsyncadd [#allocation4], 0
      %s14 = sshll.u32 %s1, 4
      %s15 = int_to_ptr.hbm [resolvable:$true] %s14
      %s16 = sshll.u32 [#allocation3], 4
      %s17 = int_to_ptr.vmem [resolvable:$true] %s16
      %22 = dma.hbm_to_vmem [thread:$0]  %s15, 4608, %s17, [#allocation4], 256, 256, 16
    $region9: #{imu_gps_forward.1} parent=1 // pred_fallthru
      _
    // Predicated region
    $region10: #{imu_gps_forward.1} parent=1 // pred_check
      _
    $region11: #{imu_gps_forward.1} parent=1 // pred_check_branch
      %24 = sbr.rel (0) target = $region13
    $region12: #{imu_gps_forward.1} parent=1 // pred_region
      %26 = dma.done [#allocation4], 4608
    $region13: #{imu_gps_forward.1} parent=1 // pred_fallthru
      _
    %v27 = vld [vmem:[%s0] sm:$0x3]
    %v28 = vld [vmem:[%s0 + $0x2] sm:$0x3]
    %v29 = vld [vmem:[%s0 + $0x4] sm:$0x3]
    %v30 = vld [vmem:[%s0 + $0x6] sm:$0x3]
    %v31 = vld [vmem:[%s0 + $0x8] sm:$0x3]
    %v32 = vld [vmem:[%s0 + $0xa] sm:$0x3]
    %v33 = vld [vmem:[%s0 + $0xc] sm:$0x3]
    %v34 = vld [vmem:[%s0 + $0xe] sm:$0x3]
    %vm35 = vcmask 41984
    %v36 = vsel %vm35, %v27, 0.0
    %v37 = vsel %vm35, %v28, 0.0
    %v38 = vadd.f32 %v36, %v37
    %v39 = vsel %vm35, %v29, 0.0
    %v40 = vadd.f32 %v38, %v39
    %v41 = vsel %vm35, %v30, 0.0
    %v42 = vadd.f32 %v40, %v41
    %v43 = vsel %vm35, %v31, 0.0
    %v44 = vadd.f32 %v42, %v43
    %v45 = vsel %vm35, %v32, 0.0
    %v46 = vadd.f32 %v44, %v45
    %v47 = vsel %vm35, %v33, 0.0
    %v48 = vadd.f32 %v46, %v47
    %v49 = vsel %vm35, %v34, 0.0
    %v50 = vadd.f32 %v48, %v49
    %v51 = vrcp.pop 8.0
    %v52 = vmul.f32 8.0, %v51
    %v53 = vsub.f32 1.0, %v52
    %v54 = vmul.f32 %v51, %v53
    %v55 = vadd.f32 %v51, %v54
    %vm56 = vweird.f32 %v51
    %v57 = vsel %vm56, %v51, %v55
    %v58 = vmul.f32 %v50, %v57
    %v59 = vsub.f32 %v27, %v58
    %v60 = vsub.f32 %v28, %v58
    %v61 = vsub.f32 %v29, %v58
    %v62 = vsub.f32 %v30, %v58
    %v63 = vsub.f32 %v31, %v58
    %v64 = vsub.f32 %v32, %v58
    %v65 = vsub.f32 %v33, %v58
    %v66 = vsub.f32 %v34, %v58
    %v67 = vmul.f32 %v59, %v59
    %v68 = vmul.f32 %v60, %v60
    %v69 = vmul.f32 %v61, %v61
    %v70 = vmul.f32 %v62, %v62
    %v71 = vmul.f32 %v63, %v63
    %v72 = vmul.f32 %v64, %v64
    %v73 = vmul.f32 %v65, %v65
    %v74 = vmul.f32 %v66, %v66
    %v75 = vsel %vm35, %v67, 0.0
    %v76 = vsel %vm35, %v68, 0.0
    %v77 = vadd.f32 %v75, %v76
    %v78 = vsel %vm35, %v69, 0.0
    %v79 = vadd.f32 %v77, %v78
    %v80 = vsel %vm35, %v70, 0.0
    %v81 = vadd.f32 %v79, %v80
    %v82 = vsel %vm35, %v71, 0.0
    %v83 = vadd.f32 %v81, %v82
    %v84 = vsel %vm35, %v72, 0.0
    %v85 = vadd.f32 %v83, %v84
    %v86 = vsel %vm35, %v73, 0.0
    %v87 = vadd.f32 %v85, %v86
    %v88 = vsel %vm35, %v74, 0.0
    %v89 = vadd.f32 %v87, %v88
    %v90 = vrcp.pop 7.0
    %v91 = vmul.f32 7.0, %v90
    %v92 = vsub.f32 1.0, %v91
    %v93 = vmul.f32 %v90, %v92
    %v94 = vadd.f32 %v90, %v93
    %vm95 = vweird.f32 %v90
    %v96 = vsel %vm95, %v90, %v94
    %v97 = vmul.f32 %v89, %v96
    %v98 = vrsqrt.pop %v97
    %v99 = vmul.f32 %v98, %v97
    %v100 = vmul.f32 %v99, %v98
    %v101 = vmul.f32 0.5, %v100
    %v102 = vsub.f32 1.5, %v101
    %v103 = vmul.f32 %v98, %v102
    %vm104 = vweird.f32 %v97
    %vm105 = vweird.f32 %v98
    %vm106 = vmor %vm104, %vm105
    %v107 = vsel %vm106, %v98, %v103
    %v108 = vmul.f32 %v97, %v107
    %v109 = vld [vmem:[#allocation3] sm:$0x3f]
    %v110 = vld [vmem:[#allocation3 + $0x10] sm:$0xff]
    %v111 = vld [vmem:[#allocation3 + $0x20] sm:$0xff]
    %v112 = vld [vmem:[#allocation3 + $0x30] sm:$0xff]
    %v113 = vld [vmem:[#allocation3 + $0x40] sm:$0xff]
    %v114 = vld [vmem:[#allocation3 + $0x50] sm:$0xff]
    %v115 = vld [vmem:[#allocation3 + $0x58] sm:$0xff]
    %v116 = vld [vmem:[#allocation3 + $0x60] sm:$0xff]
    %v117 = vld [vmem:[#allocation3 + $0x68] sm:$0xff]
    %v118 = vld [vmem:[#allocation3 + $0x70] sm:$0xff]
    %v119 = vld [vmem:[#allocation3 + $0x78] sm:$0xff]
    %v120 = vld [vmem:[#allocation3 + $0x80] sm:$0xff]
    %v121 = vld [vmem:[#allocation3 + $0x88] sm:$0xff]
    %v122 = vld [vmem:[#allocation3 + $0x90] sm:$0xff]
    %v123 = vld [vmem:[#allocation3 + $0xa0] sm:$0xff]
    %v124 = vld [vmem:[#allocation3 + $0xb0] sm:$0xff]
    %v125 = vld [vmem:[#allocation3 + $0xc0] sm:$0xff]
    %v126 = vld [vmem:[#allocation3 + $0xd0] sm:$0xff]
    %v127 = vld [vmem:[#allocation3 + $0xe0] sm:$0xff]
    %v128 = vld [vmem:[#allocation3 + $0xf0] sm:$0xff]
    %v129 = vld [vmem:[#allocation3 + $0x100] sm:$0xff]
    %v130 = vld [vmem:[#allocation3 + $0x110] sm:$0xff]
    %v131 = vperm.slane %v130, 2
    %v132 = vmul.f32 %v59, %v107
    %v133 = vmul.f32 %v60, %v107
    %v134 = vmul.f32 %v61, %v107
    %v135 = vmul.f32 %v62, %v107
    %v136 = vmul.f32 %v63, %v107
    %v137 = vmul.f32 %v64, %v107
    %v138 = vmul.f32 %v65, %v107
    %v139 = vmul.f32 %v66, %v107
    %v140 = vperm.slane %v130, 0
    %149 = vst [vmem:[#allocation1] ss:$4 sm:$0xff] %v132
    %s150 = scalar_lea.vmem [#allocation1], 1
    %151 = vst [vmem:[%s150] ss:$4 sm:$0xff] %v133
    %s152 = scalar_lea.vmem [#allocation1], 2
    %153 = vst [vmem:[%s152] ss:$4 sm:$0xff] %v134
    %s154 = scalar_lea.vmem [#allocation1], 3
    %155 = vst [vmem:[%s154] ss:$4 sm:$0xff] %v135
    %s156 = scalar_lea.vmem [#allocation1], 32
    %157 = vst [vmem:[%s156] ss:$4 sm:$0xff] %v136
    %s158 = scalar_lea.vmem [#allocation1], 33
    %159 = vst [vmem:[%s158] ss:$4 sm:$0xff] %v137
    %s160 = scalar_lea.vmem [#allocation1], 34
    %161 = vst [vmem:[%s160] ss:$4 sm:$0xff] %v138
    %s162 = scalar_lea.vmem [#allocation1], 35
    %163 = vst [vmem:[%s162] ss:$4 sm:$0xff] %v139
    %v164 = vld.sshfl [vmem:[#allocation1] sm:$0xff pattern:$0x73625140]
    %v165 = vld.sshfl [vmem:[#allocation1 + $0x20] sm:$0xff pattern:$0x73625140]
    %vm166 = vcmask 48128
    %v167 = vsel %vm166, %v164, 0
    %v169 = vsel %vm166, %v165, 0
    %vm171 = vcmask 1045504
    %v173 = vsel %vm171, %v109, 0
    %175 = vmatpush.msra.mxu0 0.0
    %176 = vmatpush.msra.mxu0 0.0
    %177 = vmatpush.msra.mxu0 0.0
    %178 = vmatpush.msra.mxu0 0.0
    %179 = vmatpush.msra.mxu0 0.0
    %180 = vmatpush.msra.mxu0 0.0
    %181 = vmatpush.msra.mxu0 0.0
    %182 = vmatpush.msra.mxu0 0.0
    %183 = vmatpush.msra.mxu0 0.0
    %184 = vmatpush.msra.mxu0 0.0
    %185 = vmatpush.msra.mxu0 0.0
    %186 = vmatpush.msra.mxu0 0.0
    %187 = vmatpush.msra.mxu0 0.0
    %188 = vmatpush.msra.mxu0 0.0
    %189 = vmatpush.msra.mxu0 0.0
    %190 = vmatpush.msra.mxu0 %v173
    %191 = vmatmul.f32.gmra.mxu0 %v167
    %v192 = vpop.f32.mrf.mxu0
    %v193 = vadd.f32 %v140, %v192
    %194 = vmatmul.f32.gmra.mxu0 %v169
    %v195 = vpop.f32.mrf.mxu0
    %v196 = vadd.f32 %v140, %v195
    %197 = vdwg.mxu0
    %v198 = vmul.f32 %v193, 0.2
    %v199 = vmul.f32 %v196, 0.2
    %v200 = vmax.f32 %v193, %v198
    %v201 = vmax.f32 %v196, %v199
    %v202 = vperm.slane %v130, 1
    %vm203 = vcmask 261120
    %v205 = vsel %vm203, %v200, 0
    %v208 = vsel %vm203, %v201, 0
    %210 = vmatpush.msra.mxu0 0.0
    %211 = vmatpush.msra.mxu0 0.0
    %212 = vmatpush.msra.mxu0 0.0
    %213 = vmatpush.msra.mxu0 0.0
    %214 = vmatpush.msra.mxu0 0.0
    %215 = vmatpush.msra.mxu0 0.0
    %216 = vmatpush.msra.mxu0 0.0
    %217 = vmatpush.msra.mxu0 0.0
    %218 = vmatpush.msra.mxu0 0.0
    %219 = vmatpush.msra.mxu0 0.0
    %220 = vmatpush.msra.mxu0 0.0
    %221 = vmatpush.msra.mxu0 0.0
    %222 = vmatpush.msra.mxu0 %v113
    %223 = vmatpush.msra.mxu0 %v112
    %224 = vmatpush.msra.mxu0 %v111
    %225 = vmatpush.msra.mxu0 %v110
    %226 = vmatmul.f32.gmra.mxu0 %v205
    %v227 = vpop.f32.mrf.mxu0
    %v228 = vadd.f32 %v202, %v227
    %229 = vmatmul.f32.gmra.mxu0 %v208
    %v230 = vpop.f32.mrf.mxu0
    %v231 = vadd.f32 %v202, %v230
    %232 = vdwg.mxu0
    %v235 = vrot.slane %v228, 2
    %v236 = vrot.slane %v228, 4
    %v237 = vrot.slane %v228, 6
    %v238 = vrot.slane %v231, 2
    %v239 = vrot.slane %v231, 4
    %v240 = vrot.slane %v231, 6
    %v247 = vxor.u32 %v228, 2147483648
    %v248 = vmul.f32 %v247, 1.442695
    %v249 = vpow.pop %v248
    %v250 = vadd.f32 %v249, 1.0
    %v251 = vrcp.pop %v250
    %v252 = vmul.f32 %v250, %v251
    %v253 = vsub.f32 1.0, %v252
    %v254 = vmul.f32 %v251, %v253
    %v255 = vadd.f32 %v251, %v254
    %vm256 = vweird.f32 %v250
    %vm257 = vweird.f32 %v251
    %vm258 = vmor %vm256, %vm257
    %v259 = vsel %vm258, %v251, %v255
    %v260 = vand.u32 2147483647, %v250
    %vm261 = vcmp.eq.f32.partialorder %v260, 8.507059e+37
    %v262 = vand.u32 %v250, 2147483648
    %v263 = vor.u32 1.1754944e-38, %v262
    %v264 = vsel %vm261, %v263, %v259
    %v265 = vmul.f32 1.0, %v264
    %v266 = vtanh.pop %v228
    %v267 = vmul.f32 %v265, 0.0
    %269 = vrot.lane.b32.xlu0 %v266, 64
    %v270 = vpop.permute.xlu0 %269
    %v272 = vmul.f32 %v265, %v270
    %274 = vrot.lane.b32.xlu0 %v272, 32
    %v275 = vpop.permute.xlu0 %274
    %v277 = vadd.f32 %v267, %v275
    %v278 = vtanh.pop %v277
    %280 = vrot.lane.b32.xlu0 %v278, 64
    %v281 = vpop.permute.xlu0 %280
    %v283 = vmul.f32 %v265, %v281
    %285 = vst [vmem:[#allocation1] ss:$4 sm:$0xff] %v283
    %v286 = vld.sshfl [vmem:[#allocation1] sm:$0xff pattern:$0x73625140]
    %287 = vrot.lane.b32.xlu0 %v286, 32
    %v288 = vpop.permute.xlu0 %287
    %v289 = vsel %vm203, %v288, 0
    %291 = vmatpush.msra.mxu0 0.0
    %292 = vmatpush.msra.mxu0 0.0
    %293 = vmatpush.msra.mxu0 0.0
    %294 = vmatpush.msra.mxu0 0.0
    %295 = vmatpush.msra.mxu0 0.0
    %296 = vmatpush.msra.mxu0 0.0
    %297 = vmatpush.msra.mxu0 0.0
    %298 = vmatpush.msra.mxu0 0.0
    %299 = vmatpush.msra.mxu0 0.0
    %300 = vmatpush.msra.mxu0 0.0
    %301 = vmatpush.msra.mxu0 0.0
    %302 = vmatpush.msra.mxu0 0.0
    %303 = vmatpush.msra.mxu0 %v120
    %304 = vmatpush.msra.mxu0 %v118
    %305 = vmatpush.msra.mxu0 %v116
    %306 = vmatpush.msra.mxu0 %v114
    %307 = vmatmul.f32.gmra.mxu0 %v289
    %v308 = vpop.f32.mrf.mxu0
    %v309 = vadd.f32 0.0, %v308
    %310 = vdwg.mxu0
    %311 = vmatpush.msra.mxu0 0.0
    %312 = vmatpush.msra.mxu0 0.0
    %313 = vmatpush.msra.mxu0 0.0
    %314 = vmatpush.msra.mxu0 0.0
    %315 = vmatpush.msra.mxu0 0.0
    %316 = vmatpush.msra.mxu0 0.0
    %317 = vmatpush.msra.mxu0 0.0
    %318 = vmatpush.msra.mxu0 0.0
    %319 = vmatpush.msra.mxu0 0.0
    %320 = vmatpush.msra.mxu0 0.0
    %321 = vmatpush.msra.mxu0 0.0
    %322 = vmatpush.msra.mxu0 0.0
    %323 = vmatpush.msra.mxu0 %v121
    %324 = vmatpush.msra.mxu0 %v119
    %325 = vmatpush.msra.mxu0 %v117
    %326 = vmatpush.msra.mxu0 %v115
    %327 = vmatmul.f32.gmra.mxu0 %v289
    %v328 = vpop.f32.mrf.mxu0
    %v329 = vadd.f32 0.0, %v328
    %330 = vdwg.mxu0
    %v331 = vadd.f32 %v329, %v131
    %v332 = vxor.u32 %v331, 2147483648
    %v333 = vmul.f32 %v332, 1.442695
    %v334 = vpow.pop %v333
    %v335 = vadd.f32 %v334, 1.0
    %v336 = vrcp.pop %v335
    %v337 = vmul.f32 %v335, %v336
    %v338 = vsub.f32 1.0, %v337
    %v339 = vmul.f32 %v336, %v338
    %v340 = vadd.f32 %v336, %v339
    %vm341 = vweird.f32 %v335
    %vm342 = vweird.f32 %v336
    %vm343 = vmor %vm341, %vm342
    %v344 = vsel %vm343, %v336, %v340
    %v345 = vand.u32 2147483647, %v335
    %vm346 = vcmp.eq.f32.partialorder %v345, 8.507059e+37
    %v347 = vand.u32 %v335, 2147483648
    %v348 = vor.u32 1.1754944e-38, %v347
    %v349 = vsel %vm346, %v348, %v344
    %v350 = vmul.f32 1.0, %v349
    %v351 = vtanh.pop %v331
    %v352 = vmul.f32 %v350, 0.0
    %354 = vrot.lane.b32.xlu0 %v351, 64
    %v355 = vpop.permute.xlu0 %354
    %v357 = vmul.f32 %v350, %v355
    %359 = vrot.lane.b32.xlu0 %v357, 32
    %v360 = vpop.permute.xlu0 %359
    %v362 = vadd.f32 %v352, %v360
    %v363 = vtanh.pop %v362
    %365 = vrot.lane.b32.xlu0 %v363, 64
    %v366 = vpop.permute.xlu0 %365
    %v368 = vmul.f32 %v350, %v366
    %370 = vrot.lane.b32.xlu0 %v368, 32
    %v371 = vpop.permute.xlu0 %370
    %vm373 = vcmask 254976
    %374 = vst.msk [vmem:[#allocation2] sm:$0x3] %vm373, %v371
    %v375 = vsel %vm203, %v371, 0
    %377 = vmatpush.msra.mxu0 0.0
    %378 = vmatpush.msra.mxu0 0.0
    %379 = vmatpush.msra.mxu0 0.0
    %380 = vmatpush.msra.mxu0 0.0
    %381 = vmatpush.msra.mxu0 0.0
    %382 = vmatpush.msra.mxu0 0.0
    %383 = vmatpush.msra.mxu0 0.0
    %384 = vmatpush.msra.mxu0 0.0
    %385 = vmatpush.msra.mxu0 0.0
    %386 = vmatpush.msra.mxu0 0.0
    %387 = vmatpush.msra.mxu0 0.0
    %388 = vmatpush.msra.mxu0 0.0
    %389 = vmatpush.msra.mxu0 %v125
    %390 = vmatpush.msra.mxu0 %v124
    %391 = vmatpush.msra.mxu0 %v123
    %392 = vmatpush.msra.mxu0 %v122
    %393 = vmatmul.f32.gmra.mxu0 %v375
    %v394 = vpop.f32.mrf.mxu0
    %v395 = vadd.f32 0.0, %v394
    %396 = vdwg.mxu0
    %v397 = vadd.f32 %v235, %v309
    %v398 = vxor.u32 %v397, 2147483648
    %v399 = vmul.f32 %v398, 1.442695
    %v400 = vpow.pop %v399
    %v401 = vadd.f32 %v400, 1.0
    %v402 = vrcp.pop %v401
    %v403 = vmul.f32 %v401, %v402
    %v404 = vsub.f32 1.0, %v403
    %v405 = vmul.f32 %v402, %v404
    %v406 = vadd.f32 %v402, %v405
    %vm407 = vweird.f32 %v401
    %vm408 = vweird.f32 %v402
    %vm409 = vmor %vm407, %vm408
    %v410 = vsel %vm409, %v402, %v406
    %v411 = vand.u32 2147483647, %v401
    %vm412 = vcmp.eq.f32.partialorder %v411, 8.507059e+37
    %v413 = vand.u32 %v401, 2147483648
    %v414 = vor.u32 1.1754944e-38, %v413
    %v415 = vsel %vm412, %v414, %v410
    %v416 = vmul.f32 1.0, %v415
    %v417 = vtanh.pop %v397
    %v418 = vmul.f32 %v416, %v277
    %420 = vrot.lane.b32.xlu0 %v417, 64
    %v421 = vpop.permute.xlu0 %420
    %v423 = vmul.f32 %v416, %v421
    %425 = vrot.lane.b32.xlu0 %v423, 32
    %v426 = vpop.permute.xlu0 %425
    %v428 = vadd.f32 %v418, %v426
    %v429 = vtanh.pop %v428
    %431 = vrot.lane.b32.xlu0 %v429, 64
    %v432 = vpop.permute.xlu0 %431
    %v434 = vmul.f32 %v416, %v432
    %436 = vst [vmem:[#allocation1] ss:$4 sm:$0xff] %v434
    %v437 = vld.sshfl [vmem:[#allocation1] sm:$0xff pattern:$0x73625140]
    %438 = vrot.lane.b32.xlu0 %v437, 32
    %v439 = vpop.permute.xlu0 %438
    %v440 = vsel %vm203, %v439, 0
    %442 = vmatpush.msra.mxu0 0.0
    %443 = vmatpush.msra.mxu0 0.0
    %444 = vmatpush.msra.mxu0 0.0
    %445 = vmatpush.msra.mxu0 0.0
    %446 = vmatpush.msra.mxu0 0.0
    %447 = vmatpush.msra.mxu0 0.0
    %448 = vmatpush.msra.mxu0 0.0
    %449 = vmatpush.msra.mxu0 0.0
    %450 = vmatpush.msra.mxu0 0.0
    %451 = vmatpush.msra.mxu0 0.0
    %452 = vmatpush.msra.mxu0 0.0
    %453 = vmatpush.msra.mxu0 0.0
    %454 = vmatpush.msra.mxu0 %v120
    %455 = vmatpush.msra.mxu0 %v118
    %456 = vmatpush.msra.mxu0 %v116
    %457 = vmatpush.msra.mxu0 %v114
    %458 = vmatmul.f32.gmra.mxu0 %v440
    %v459 = vpop.f32.mrf.mxu0
    %v460 = vadd.f32 0.0, %v459
    %461 = vdwg.mxu0
    %462 = vmatpush.msra.mxu0 0.0
    %463 = vmatpush.msra.mxu0 0.0
    %464 = vmatpush.msra.mxu0 0.0
    %465 = vmatpush.msra.mxu0 0.0
    %466 = vmatpush.msra.mxu0 0.0
    %467 = vmatpush.msra.mxu0 0.0
    %468 = vmatpush.msra.mxu0 0.0
    %469 = vmatpush.msra.mxu0 0.0
    %470 = vmatpush.msra.mxu0 0.0
    %471 = vmatpush.msra.mxu0 0.0
    %472 = vmatpush.msra.mxu0 0.0
    %473 = vmatpush.msra.mxu0 0.0
    %474 = vmatpush.msra.mxu0 %v121
    %475 = vmatpush.msra.mxu0 %v119
    %476 = vmatpush.msra.mxu0 %v117
    %477 = vmatpush.msra.mxu0 %v115
    %478 = vmatmul.f32.gmra.mxu0 %v440
    %v479 = vpop.f32.mrf.mxu0
    %v480 = vadd.f32 0.0, %v479
    %481 = vdwg.mxu0
    %v482 = vadd.f32 %v480, %v395
    %v483 = vadd.f32 %v482, %v131
    %v484 = vxor.u32 %v483, 2147483648
    %v485 = vmul.f32 %v484, 1.442695
    %v486 = vpow.pop %v485
    %v487 = vadd.f32 %v486, 1.0
    %v488 = vrcp.pop %v487
    %v489 = vmul.f32 %v487, %v488
    %v490 = vsub.f32 1.0, %v489
    %v491 = vmul.f32 %v488, %v490
    %v492 = vadd.f32 %v488, %v491
    %vm493 = vweird.f32 %v487
    %vm494 = vweird.f32 %v488
    %vm495 = vmor %vm493, %vm494
    %v496 = vsel %vm495, %v488, %v492
    %v497 = vand.u32 2147483647, %v487
    %vm498 = vcmp.eq.f32.partialorder %v497, 8.507059e+37
    %v499 = vand.u32 %v487, 2147483648
    %v500 = vor.u32 1.1754944e-38, %v499
    %v501 = vsel %vm498, %v500, %v496
    %v502 = vmul.f32 1.0, %v501
    %v503 = vtanh.pop %v483
    %v504 = vmul.f32 %v502, %v362
    %506 = vrot.lane.b32.xlu0 %v503, 64
    %v507 = vpop.permute.xlu0 %506
    %v509 = vmul.f32 %v502, %v507
    %511 = vrot.lane.b32.xlu0 %v509, 32
    %v512 = vpop.permute.xlu0 %511
    %v514 = vadd.f32 %v504, %v512
    %v515 = vtanh.pop %v514
    %517 = vrot.lane.b32.xlu0 %v515, 64
    %v518 = vpop.permute.xlu0 %517
    %v520 = vmul.f32 %v502, %v518
    %522 = vrot.lane.b32.xlu0 %v520, 32
    %v523 = vpop.permute.xlu0 %522
    %525 = vst.msk [vmem:[#allocation2 + $0x2] sm:$0x3] %vm373, %v523
    %v526 = vsel %vm203, %v523, 0
    %528 = vmatpush.msra.mxu0 0.0
    %529 = vmatpush.msra.mxu0 0.0
    %530 = vmatpush.msra.mxu0 0.0
    %531 = vmatpush.msra.mxu0 0.0
    %532 = vmatpush.msra.mxu0 0.0
    %533 = vmatpush.msra.mxu0 0.0
    %534 = vmatpush.msra.mxu0 0.0
    %535 = vmatpush.msra.mxu0 0.0
    %536 = vmatpush.msra.mxu0 0.0
    %537 = vmatpush.msra.mxu0 0.0
    %538 = vmatpush.msra.mxu0 0.0
    %539 = vmatpush.msra.mxu0 0.0
    %540 = vmatpush.msra.mxu0 %v125
    %541 = vmatpush.msra.mxu0 %v124
    %542 = vmatpush.msra.mxu0 %v123
    %543 = vmatpush.msra.mxu0 %v122
    %544 = vmatmul.f32.gmra.mxu0 %v526
    %v545 = vpop.f32.mrf.mxu0
    %v546 = vadd.f32 0.0, %v545
    %547 = vdwg.mxu0
    %v548 = vadd.f32 %v236, %v460
    %v549 = vxor.u32 %v548, 2147483648
    %v550 = vmul.f32 %v549, 1.442695
    %v551 = vpow.pop %v550
    %v552 = vadd.f32 %v551, 1.0
    %v553 = vrcp.pop %v552
    %v554 = vmul.f32 %v552, %v553
    %v555 = vsub.f32 1.0, %v554
    %v556 = vmul.f32 %v553, %v555
    %v557 = vadd.f32 %v553, %v556
    %vm558 = vweird.f32 %v552
    %vm559 = vweird.f32 %v553
    %vm560 = vmor %vm558, %vm559
    %v561 = vsel %vm560, %v553, %v557
    %v562 = vand.u32 2147483647, %v552
    %vm563 = vcmp.eq.f32.partialorder %v562, 8.507059e+37
    %v564 = vand.u32 %v552, 2147483648
    %v565 = vor.u32 1.1754944e-38, %v564
    %v566 = vsel %vm563, %v565, %v561
    %v567 = vmul.f32 1.0, %v566
    %v568 = vtanh.pop %v548
    %v569 = vmul.f32 %v567, %v428
    %571 = vrot.lane.b32.xlu0 %v568, 64
    %v572 = vpop.permute.xlu0 %571
    %v574 = vmul.f32 %v567, %v572
    %576 = vrot.lane.b32.xlu0 %v574, 32
    %v577 = vpop.permute.xlu0 %576
    %v579 = vadd.f32 %v569, %v577
    %v580 = vtanh.pop %v579
    %582 = vrot.lane.b32.xlu0 %v580, 64
    %v583 = vpop.permute.xlu0 %582
    %v585 = vmul.f32 %v567, %v583
    %587 = vst [vmem:[#allocation1] ss:$4 sm:$0xff] %v585
    %v588 = vld.sshfl [vmem:[#allocation1] sm:$0xff pattern:$0x73625140]
    %589 = vrot.lane.b32.xlu0 %v588, 32
    %v590 = vpop.permute.xlu0 %589
    %v591 = vsel %vm203, %v590, 0
    %593 = vmatpush.msra.mxu0 0.0
    %594 = vmatpush.msra.mxu0 0.0
    %595 = vmatpush.msra.mxu0 0.0
    %596 = vmatpush.msra.mxu0 0.0
    %597 = vmatpush.msra.mxu0 0.0
    %598 = vmatpush.msra.mxu0 0.0
    %599 = vmatpush.msra.mxu0 0.0
    %600 = vmatpush.msra.mxu0 0.0
    %601 = vmatpush.msra.mxu0 0.0
    %602 = vmatpush.msra.mxu0 0.0
    %603 = vmatpush.msra.mxu0 0.0
    %604 = vmatpush.msra.mxu0 0.0
    %605 = vmatpush.msra.mxu0 %v120
    %606 = vmatpush.msra.mxu0 %v118
    %607 = vmatpush.msra.mxu0 %v116
    %608 = vmatpush.msra.mxu0 %v114
    %609 = vmatmul.f32.gmra.mxu0 %v591
    %v610 = vpop.f32.mrf.mxu0
    %v611 = vadd.f32 0.0, %v610
    %612 = vdwg.mxu0
    %613 = vmatpush.msra.mxu0 0.0
    %614 = vmatpush.msra.mxu0 0.0
    %615 = vmatpush.msra.mxu0 0.0
    %616 = vmatpush.msra.mxu0 0.0
    %617 = vmatpush.msra.mxu0 0.0
    %618 = vmatpush.msra.mxu0 0.0
    %619 = vmatpush.msra.mxu0 0.0
    %620 = vmatpush.msra.mxu0 0.0
    %621 = vmatpush.msra.mxu0 0.0
    %622 = vmatpush.msra.mxu0 0.0
    %623 = vmatpush.msra.mxu0 0.0
    %624 = vmatpush.msra.mxu0 0.0
    %625 = vmatpush.msra.mxu0 %v121
    %626 = vmatpush.msra.mxu0 %v119
    %627 = vmatpush.msra.mxu0 %v117
    %628 = vmatpush.msra.mxu0 %v115
    %629 = vmatmul.f32.gmra.mxu0 %v591
    %v630 = vpop.f32.mrf.mxu0
    %v631 = vadd.f32 0.0, %v630
    %632 = vdwg.mxu0
    %v633 = vadd.f32 %v631, %v546
    %v634 = vadd.f32 %v633, %v131
    %v635 = vxor.u32 %v634, 2147483648
    %v636 = vmul.f32 %v635, 1.442695
    %v637 = vpow.pop %v636
    %v638 = vadd.f32 %v637, 1.0
    %v639 = vrcp.pop %v638
    %v640 = vmul.f32 %v638, %v639
    %v641 = vsub.f32 1.0, %v640
    %v642 = vmul.f32 %v639, %v641
    %v643 = vadd.f32 %v639, %v642
    %vm644 = vweird.f32 %v638
    %vm645 = vweird.f32 %v639
    %vm646 = vmor %vm644, %vm645
    %v647 = vsel %vm646, %v639, %v643
    %v648 = vand.u32 2147483647, %v638
    %vm649 = vcmp.eq.f32.partialorder %v648, 8.507059e+37
    %v650 = vand.u32 %v638, 2147483648
    %v651 = vor.u32 1.1754944e-38, %v650
    %v652 = vsel %vm649, %v651, %v647
    %v653 = vmul.f32 1.0, %v652
    %v654 = vtanh.pop %v634
    %v655 = vmul.f32 %v653, %v514
    %657 = vrot.lane.b32.xlu0 %v654, 64
    %v658 = vpop.permute.xlu0 %657
    %v660 = vmul.f32 %v653, %v658
    %662 = vrot.lane.b32.xlu0 %v660, 32
    %v663 = vpop.permute.xlu0 %662
    %v665 = vadd.f32 %v655, %v663
    %v666 = vtanh.pop %v665
    %668 = vrot.lane.b32.xlu0 %v666, 64
    %v669 = vpop.permute.xlu0 %668
    %v671 = vmul.f32 %v653, %v669
    %673 = vrot.lane.b32.xlu0 %v671, 32
    %v674 = vpop.permute.xlu0 %673
    %676 = vst.msk [vmem:[#allocation2 + $0x4] sm:$0x3] %vm373, %v674
    %v677 = vsel %vm203, %v674, 0
    %679 = vmatpush.msra.mxu0 0.0
    %680 = vmatpush.msra.mxu0 0.0
    %681 = vmatpush.msra.mxu0 0.0
    %682 = vmatpush.msra.mxu0 0.0
    %683 = vmatpush.msra.mxu0 0.0
    %684 = vmatpush.msra.mxu0 0.0
    %685 = vmatpush.msra.mxu0 0.0
    %686 = vmatpush.msra.mxu0 0.0
    %687 = vmatpush.msra.mxu0 0.0
    %688 = vmatpush.msra.mxu0 0.0
    %689 = vmatpush.msra.mxu0 0.0
    %690 = vmatpush.msra.mxu0 0.0
    %691 = vmatpush.msra.mxu0 %v125
    %692 = vmatpush.msra.mxu0 %v124
    %693 = vmatpush.msra.mxu0 %v123
    %694 = vmatpush.msra.mxu0 %v122
    %695 = vmatmul.f32.gmra.mxu0 %v677
    %v696 = vpop.f32.mrf.mxu0
    %v697 = vadd.f32 0.0, %v696
    %698 = vdwg.mxu0
    %v699 = vadd.f32 %v237, %v611
    %v700 = vxor.u32 %v699, 2147483648
    %v701 = vmul.f32 %v700, 1.442695
    %v702 = vpow.pop %v701
    %v703 = vadd.f32 %v702, 1.0
    %v704 = vrcp.pop %v703
    %v705 = vmul.f32 %v703, %v704
    %v706 = vsub.f32 1.0, %v705
    %v707 = vmul.f32 %v704, %v706
    %v708 = vadd.f32 %v704, %v707
    %vm709 = vweird.f32 %v703
    %vm710 = vweird.f32 %v704
    %vm711 = vmor %vm709, %vm710
    %v712 = vsel %vm711, %v704, %v708
    %v713 = vand.u32 2147483647, %v703
    %vm714 = vcmp.eq.f32.partialorder %v713, 8.507059e+37
    %v715 = vand.u32 %v703, 2147483648
    %v716 = vor.u32 1.1754944e-38, %v715
    %v717 = vsel %vm714, %v716, %v712
    %v718 = vmul.f32 1.0, %v717
    %v719 = vtanh.pop %v699
    %v720 = vmul.f32 %v718, %v579
    %722 = vrot.lane.b32.xlu0 %v719, 64
    %v723 = vpop.permute.xlu0 %722
    %v725 = vmul.f32 %v718, %v723
    %727 = vrot.lane.b32.xlu0 %v725, 32
    %v728 = vpop.permute.xlu0 %727
    %v730 = vadd.f32 %v720, %v728
    %v731 = vtanh.pop %v730
    %733 = vrot.lane.b32.xlu0 %v731, 64
    %v734 = vpop.permute.xlu0 %733
    %v736 = vmul.f32 %v718, %v734
    %738 = vst [vmem:[#allocation1] ss:$4 sm:$0xff] %v736
    %v739 = vld.sshfl [vmem:[#allocation1] sm:$0xff pattern:$0x73625140]
    %740 = vrot.lane.b32.xlu0 %v739, 32
    %v741 = vpop.permute.xlu0 %740
    %v742 = vsel %vm203, %v741, 0
    %744 = vmatpush.msra.mxu0 0.0
    %745 = vmatpush.msra.mxu0 0.0
    %746 = vmatpush.msra.mxu0 0.0
    %747 = vmatpush.msra.mxu0 0.0
    %748 = vmatpush.msra.mxu0 0.0
    %749 = vmatpush.msra.mxu0 0.0
    %750 = vmatpush.msra.mxu0 0.0
    %751 = vmatpush.msra.mxu0 0.0
    %752 = vmatpush.msra.mxu0 0.0
    %753 = vmatpush.msra.mxu0 0.0
    %754 = vmatpush.msra.mxu0 0.0
    %755 = vmatpush.msra.mxu0 0.0
    %756 = vmatpush.msra.mxu0 %v120
    %757 = vmatpush.msra.mxu0 %v118
    %758 = vmatpush.msra.mxu0 %v116
    %759 = vmatpush.msra.mxu0 %v114
    %760 = vmatmul.f32.gmra.mxu0 %v742
    %v761 = vpop.f32.mrf.mxu0
    %v762 = vadd.f32 0.0, %v761
    %763 = vdwg.mxu0
    %764 = vmatpush.msra.mxu0 0.0
    %765 = vmatpush.msra.mxu0 0.0
    %766 = vmatpush.msra.mxu0 0.0
    %767 = vmatpush.msra.mxu0 0.0
    %768 = vmatpush.msra.mxu0 0.0
    %769 = vmatpush.msra.mxu0 0.0
    %770 = vmatpush.msra.mxu0 0.0
    %771 = vmatpush.msra.mxu0 0.0
    %772 = vmatpush.msra.mxu0 0.0
    %773 = vmatpush.msra.mxu0 0.0
    %774 = vmatpush.msra.mxu0 0.0
    %775 = vmatpush.msra.mxu0 0.0
    %776 = vmatpush.msra.mxu0 %v121
    %777 = vmatpush.msra.mxu0 %v119
    %778 = vmatpush.msra.mxu0 %v117
    %779 = vmatpush.msra.mxu0 %v115
    %780 = vmatmul.f32.gmra.mxu0 %v742
    %v781 = vpop.f32.mrf.mxu0
    %v782 = vadd.f32 0.0, %v781
    %783 = vdwg.mxu0
    %v784 = vadd.f32 %v782, %v697
    %v785 = vadd.f32 %v784, %v131
    %v786 = vxor.u32 %v785, 2147483648
    %v787 = vmul.f32 %v786, 1.442695
    %v788 = vpow.pop %v787
    %v789 = vadd.f32 %v788, 1.0
    %v790 = vrcp.pop %v789
    %v791 = vmul.f32 %v789, %v790
    %v792 = vsub.f32 1.0, %v791
    %v793 = vmul.f32 %v790, %v792
    %v794 = vadd.f32 %v790, %v793
    %vm795 = vweird.f32 %v789
    %vm796 = vweird.f32 %v790
    %vm797 = vmor %vm795, %vm796
    %v798 = vsel %vm797, %v790, %v794
    %v799 = vand.u32 2147483647, %v789
    %vm800 = vcmp.eq.f32.partialorder %v799, 8.507059e+37
    %v801 = vand.u32 %v789, 2147483648
    %v802 = vor.u32 1.1754944e-38, %v801
    %v803 = vsel %vm800, %v802, %v798
    %v804 = vmul.f32 1.0, %v803
    %v805 = vtanh.pop %v785
    %v806 = vmul.f32 %v804, %v665
    %808 = vrot.lane.b32.xlu0 %v805, 64
    %v809 = vpop.permute.xlu0 %808
    %v811 = vmul.f32 %v804, %v809
    %813 = vrot.lane.b32.xlu0 %v811, 32
    %v814 = vpop.permute.xlu0 %813
    %v816 = vadd.f32 %v806, %v814
    %v817 = vtanh.pop %v816
    %819 = vrot.lane.b32.xlu0 %v817, 64
    %v820 = vpop.permute.xlu0 %819
    %v822 = vmul.f32 %v804, %v820
    %824 = vrot.lane.b32.xlu0 %v822, 32
    %v825 = vpop.permute.xlu0 %824
    %827 = vst.msk [vmem:[#allocation2 + $0x6] sm:$0x3] %vm373, %v825
    %v828 = vsel %vm203, %v825, 0
    %830 = vmatpush.msra.mxu0 0.0
    %831 = vmatpush.msra.mxu0 0.0
    %832 = vmatpush.msra.mxu0 0.0
    %833 = vmatpush.msra.mxu0 0.0
    %834 = vmatpush.msra.mxu0 0.0
    %835 = vmatpush.msra.mxu0 0.0
    %836 = vmatpush.msra.mxu0 0.0
    %837 = vmatpush.msra.mxu0 0.0
    %838 = vmatpush.msra.mxu0 0.0
    %839 = vmatpush.msra.mxu0 0.0
    %840 = vmatpush.msra.mxu0 0.0
    %841 = vmatpush.msra.mxu0 0.0
    %842 = vmatpush.msra.mxu0 %v125
    %843 = vmatpush.msra.mxu0 %v124
    %844 = vmatpush.msra.mxu0 %v123
    %845 = vmatpush.msra.mxu0 %v122
    %846 = vmatmul.f32.gmra.mxu0 %v828
    %v847 = vpop.f32.mrf.mxu0
    %v848 = vadd.f32 0.0, %v847
    %849 = vdwg.mxu0
    %v850 = vadd.f32 %v231, %v762
    %v851 = vxor.u32 %v850, 2147483648
    %v852 = vmul.f32 %v851, 1.442695
    %v853 = vpow.pop %v852
    %v854 = vadd.f32 %v853, 1.0
    %v855 = vrcp.pop %v854
    %v856 = vmul.f32 %v854, %v855
    %v857 = vsub.f32 1.0, %v856
    %v858 = vmul.f32 %v855, %v857
    %v859 = vadd.f32 %v855, %v858
    %vm860 = vweird.f32 %v854
    %vm861 = vweird.f32 %v855
    %vm862 = vmor %vm860, %vm861
    %v863 = vsel %vm862, %v855, %v859
    %v864 = vand.u32 2147483647, %v854
    %vm865 = vcmp.eq.f32.partialorder %v864, 8.507059e+37
    %v866 = vand.u32 %v854, 2147483648
    %v867 = vor.u32 1.1754944e-38, %v866
    %v868 = vsel %vm865, %v867, %v863
    %v869 = vmul.f32 1.0, %v868
    %v870 = vtanh.pop %v850
    %v871 = vmul.f32 %v869, %v730
    %873 = vrot.lane.b32.xlu0 %v870, 64
    %v874 = vpop.permute.xlu0 %873
    %v876 = vmul.f32 %v869, %v874
    %878 = vrot.lane.b32.xlu0 %v876, 32
    %v879 = vpop.permute.xlu0 %878
    %v881 = vadd.f32 %v871, %v879
    %v882 = vtanh.pop %v881
    %884 = vrot.lane.b32.xlu0 %v882, 64
    %v885 = vpop.permute.xlu0 %884
    %v887 = vmul.f32 %v869, %v885
    %889 = vst [vmem:[#allocation1] ss:$4 sm:$0xff] %v887
    %v890 = vld.sshfl [vmem:[#allocation1] sm:$0xff pattern:$0x73625140]
    %891 = vrot.lane.b32.xlu0 %v890, 32
    %v892 = vpop.permute.xlu0 %891
    %v893 = vsel %vm203, %v892, 0
    %895 = vmatpush.msra.mxu0 0.0
    %896 = vmatpush.msra.mxu0 0.0
    %897 = vmatpush.msra.mxu0 0.0
    %898 = vmatpush.msra.mxu0 0.0
    %899 = vmatpush.msra.mxu0 0.0
    %900 = vmatpush.msra.mxu0 0.0
    %901 = vmatpush.msra.mxu0 0.0
    %902 = vmatpush.msra.mxu0 0.0
    %903 = vmatpush.msra.mxu0 0.0
    %904 = vmatpush.msra.mxu0 0.0
    %905 = vmatpush.msra.mxu0 0.0
    %906 = vmatpush.msra.mxu0 0.0
    %907 = vmatpush.msra.mxu0 %v120
    %908 = vmatpush.msra.mxu0 %v118
    %909 = vmatpush.msra.mxu0 %v116
    %910 = vmatpush.msra.mxu0 %v114
    %911 = vmatmul.f32.gmra.mxu0 %v893
    %v912 = vpop.f32.mrf.mxu0
    %v913 = vadd.f32 0.0, %v912
    %914 = vdwg.mxu0
    %915 = vmatpush.msra.mxu0 0.0
    %916 = vmatpush.msra.mxu0 0.0
    %917 = vmatpush.msra.mxu0 0.0
    %918 = vmatpush.msra.mxu0 0.0
    %919 = vmatpush.msra.mxu0 0.0
    %920 = vmatpush.msra.mxu0 0.0
    %921 = vmatpush.msra.mxu0 0.0
    %922 = vmatpush.msra.mxu0 0.0
    %923 = vmatpush.msra.mxu0 0.0
    %924 = vmatpush.msra.mxu0 0.0
    %925 = vmatpush.msra.mxu0 0.0
    %926 = vmatpush.msra.mxu0 0.0
    %927 = vmatpush.msra.mxu0 %v121
    %928 = vmatpush.msra.mxu0 %v119
    %929 = vmatpush.msra.mxu0 %v117
    %930 = vmatpush.msra.mxu0 %v115
    %931 = vmatmul.f32.gmra.mxu0 %v893
    %v932 = vpop.f32.mrf.mxu0
    %v933 = vadd.f32 0.0, %v932
    %934 = vdwg.mxu0
    %v935 = vadd.f32 %v933, %v848
    %v936 = vadd.f32 %v935, %v131
    %v937 = vxor.u32 %v936, 2147483648
    %v938 = vmul.f32 %v937, 1.442695
    %v939 = vpow.pop %v938
    %v940 = vadd.f32 %v939, 1.0
    %v941 = vrcp.pop %v940
    %v942 = vmul.f32 %v940, %v941
    %v943 = vsub.f32 1.0, %v942
    %v944 = vmul.f32 %v941, %v943
    %v945 = vadd.f32 %v941, %v944
    %vm946 = vweird.f32 %v940
    %vm947 = vweird.f32 %v941
    %vm948 = vmor %vm946, %vm947
    %v949 = vsel %vm948, %v941, %v945
    %v950 = vand.u32 2147483647, %v940
    %vm951 = vcmp.eq.f32.partialorder %v950, 8.507059e+37
    %v952 = vand.u32 %v940, 2147483648
    %v953 = vor.u32 1.1754944e-38, %v952
    %v954 = vsel %vm951, %v953, %v949
    %v955 = vmul.f32 1.0, %v954
    %v956 = vtanh.pop %v936
    %v957 = vmul.f32 %v955, %v816
    %959 = vrot.lane.b32.xlu0 %v956, 64
    %v960 = vpop.permute.xlu0 %959
    %v962 = vmul.f32 %v955, %v960
    %964 = vrot.lane.b32.xlu0 %v962, 32
    %v965 = vpop.permute.xlu0 %964
    %v967 = vadd.f32 %v957, %v965
    %v968 = vtanh.pop %v967
    %970 = vrot.lane.b32.xlu0 %v968, 64
    %v971 = vpop.permute.xlu0 %970
    %v973 = vmul.f32 %v955, %v971
    %975 = vrot.lane.b32.xlu0 %v973, 32
    %v976 = vpop.permute.xlu0 %975
    %978 = vst.msk [vmem:[#allocation2 + $0x8] sm:$0x3] %vm373, %v976
    %v979 = vsel %vm203, %v976, 0
    %981 = vmatpush.msra.mxu0 0.0
    %982 = vmatpush.msra.mxu0 0.0
    %983 = vmatpush.msra.mxu0 0.0
    %984 = vmatpush.msra.mxu0 0.0
    %985 = vmatpush.msra.mxu0 0.0
    %986 = vmatpush.msra.mxu0 0.0
    %987 = vmatpush.msra.mxu0 0.0
    %988 = vmatpush.msra.mxu0 0.0
    %989 = vmatpush.msra.mxu0 0.0
    %990 = vmatpush.msra.mxu0 0.0
    %991 = vmatpush.msra.mxu0 0.0
    %992 = vmatpush.msra.mxu0 0.0
    %993 = vmatpush.msra.mxu0 %v125
    %994 = vmatpush.msra.mxu0 %v124
    %995 = vmatpush.msra.mxu0 %v123
    %996 = vmatpush.msra.mxu0 %v122
    %997 = vmatmul.f32.gmra.mxu0 %v979
    %v998 = vpop.f32.mrf.mxu0
    %v999 = vadd.f32 0.0, %v998
    %1000 = vdwg.mxu0
    %v1001 = vadd.f32 %v238, %v913
    %v1002 = vxor.u32 %v1001, 2147483648
    %v1003 = vmul.f32 %v1002, 1.442695
    %v1004 = vpow.pop %v1003
    %v1005 = vadd.f32 %v1004, 1.0
    %v1006 = vrcp.pop %v1005
    %v1007 = vmul.f32 %v1005, %v1006
    %v1008 = vsub.f32 1.0, %v1007
    %v1009 = vmul.f32 %v1006, %v1008
    %v1010 = vadd.f32 %v1006, %v1009
    %vm1011 = vweird.f32 %v1005
    %vm1012 = vweird.f32 %v1006
    %vm1013 = vmor %vm1011, %vm1012
    %v1014 = vsel %vm1013, %v1006, %v1010
    %v1015 = vand.u32 2147483647, %v1005
    %vm1016 = vcmp.eq.f32.partialorder %v1015, 8.507059e+37
    %v1017 = vand.u32 %v1005, 2147483648
    %v1018 = vor.u32 1.1754944e-38, %v1017
    %v1019 = vsel %vm1016, %v1018, %v1014
    %v1020 = vmul.f32 1.0, %v1019
    %v1021 = vtanh.pop %v1001
    %v1022 = vmul.f32 %v1020, %v881
    %1024 = vrot.lane.b32.xlu0 %v1021, 64
    %v1025 = vpop.permute.xlu0 %1024
    %v1027 = vmul.f32 %v1020, %v1025
    %1029 = vrot.lane.b32.xlu0 %v1027, 32
    %v1030 = vpop.permute.xlu0 %1029
    %v1032 = vadd.f32 %v1022, %v1030
    %v1033 = vtanh.pop %v1032
    %1035 = vrot.lane.b32.xlu0 %v1033, 64
    %v1036 = vpop.permute.xlu0 %1035
    %v1038 = vmul.f32 %v1020, %v1036
    %1040 = vst [vmem:[#allocation1] ss:$4 sm:$0xff] %v1038
    %v1041 = vld.sshfl [vmem:[#allocation1] sm:$0xff pattern:$0x73625140]
    %1042 = vrot.lane.b32.xlu0 %v1041, 32
    %v1043 = vpop.permute.xlu0 %1042
    %v1044 = vsel %vm203, %v1043, 0
    %1046 = vmatpush.msra.mxu0 0.0
    %1047 = vmatpush.msra.mxu0 0.0
    %1048 = vmatpush.msra.mxu0 0.0
    %1049 = vmatpush.msra.mxu0 0.0
    %1050 = vmatpush.msra.mxu0 0.0
    %1051 = vmatpush.msra.mxu0 0.0
    %1052 = vmatpush.msra.mxu0 0.0
    %1053 = vmatpush.msra.mxu0 0.0
    %1054 = vmatpush.msra.mxu0 0.0
    %1055 = vmatpush.msra.mxu0 0.0
    %1056 = vmatpush.msra.mxu0 0.0
    %1057 = vmatpush.msra.mxu0 0.0
    %1058 = vmatpush.msra.mxu0 %v120
    %1059 = vmatpush.msra.mxu0 %v118
    %1060 = vmatpush.msra.mxu0 %v116
    %1061 = vmatpush.msra.mxu0 %v114
    %1062 = vmatmul.f32.gmra.mxu0 %v1044
    %v1063 = vpop.f32.mrf.mxu0
    %v1064 = vadd.f32 0.0, %v1063
    %1065 = vdwg.mxu0
    %1066 = vmatpush.msra.mxu0 0.0
    %1067 = vmatpush.msra.mxu0 0.0
    %1068 = vmatpush.msra.mxu0 0.0
    %1069 = vmatpush.msra.mxu0 0.0
    %1070 = vmatpush.msra.mxu0 0.0
    %1071 = vmatpush.msra.mxu0 0.0
    %1072 = vmatpush.msra.mxu0 0.0
    %1073 = vmatpush.msra.mxu0 0.0
    %1074 = vmatpush.msra.mxu0 0.0
    %1075 = vmatpush.msra.mxu0 0.0
    %1076 = vmatpush.msra.mxu0 0.0
    %1077 = vmatpush.msra.mxu0 0.0
    %1078 = vmatpush.msra.mxu0 %v121
    %1079 = vmatpush.msra.mxu0 %v119
    %1080 = vmatpush.msra.mxu0 %v117
    %1081 = vmatpush.msra.mxu0 %v115
    %1082 = vmatmul.f32.gmra.mxu0 %v1044
    %v1083 = vpop.f32.mrf.mxu0
    %v1084 = vadd.f32 0.0, %v1083
    %1085 = vdwg.mxu0
    %v1086 = vadd.f32 %v1084, %v999
    %v1087 = vadd.f32 %v1086, %v131
    %v1088 = vxor.u32 %v1087, 2147483648
    %v1089 = vmul.f32 %v1088, 1.442695
    %v1090 = vpow.pop %v1089
    %v1091 = vadd.f32 %v1090, 1.0
    %v1092 = vrcp.pop %v1091
    %v1093 = vmul.f32 %v1091, %v1092
    %v1094 = vsub.f32 1.0, %v1093
    %v1095 = vmul.f32 %v1092, %v1094
    %v1096 = vadd.f32 %v1092, %v1095
    %vm1097 = vweird.f32 %v1091
    %vm1098 = vweird.f32 %v1092
    %vm1099 = vmor %vm1097, %vm1098
    %v1100 = vsel %vm1099, %v1092, %v1096
    %v1101 = vand.u32 2147483647, %v1091
    %vm1102 = vcmp.eq.f32.partialorder %v1101, 8.507059e+37
    %v1103 = vand.u32 %v1091, 2147483648
    %v1104 = vor.u32 1.1754944e-38, %v1103
    %v1105 = vsel %vm1102, %v1104, %v1100
    %v1106 = vmul.f32 1.0, %v1105
    %v1107 = vtanh.pop %v1087
    %v1108 = vmul.f32 %v1106, %v967
    %1110 = vrot.lane.b32.xlu0 %v1107, 64
    %v1111 = vpop.permute.xlu0 %1110
    %v1113 = vmul.f32 %v1106, %v1111
    %1115 = vrot.lane.b32.xlu0 %v1113, 32
    %v1116 = vpop.permute.xlu0 %1115
    %v1118 = vadd.f32 %v1108, %v1116
    %v1119 = vtanh.pop %v1118
    %1121 = vrot.lane.b32.xlu0 %v1119, 64
    %v1122 = vpop.permute.xlu0 %1121
    %v1124 = vmul.f32 %v1106, %v1122
    %1126 = vrot.lane.b32.xlu0 %v1124, 32
    %v1127 = vpop.permute.xlu0 %1126
    %1129 = vst.msk [vmem:[#allocation2 + $0xa] sm:$0x3] %vm373, %v1127
    %v1130 = vsel %vm203, %v1127, 0
    %1132 = vmatpush.msra.mxu0 0.0
    %1133 = vmatpush.msra.mxu0 0.0
    %1134 = vmatpush.msra.mxu0 0.0
    %1135 = vmatpush.msra.mxu0 0.0
    %1136 = vmatpush.msra.mxu0 0.0
    %1137 = vmatpush.msra.mxu0 0.0
    %1138 = vmatpush.msra.mxu0 0.0
    %1139 = vmatpush.msra.mxu0 0.0
    %1140 = vmatpush.msra.mxu0 0.0
    %1141 = vmatpush.msra.mxu0 0.0
    %1142 = vmatpush.msra.mxu0 0.0
    %1143 = vmatpush.msra.mxu0 0.0
    %1144 = vmatpush.msra.mxu0 %v125
    %1145 = vmatpush.msra.mxu0 %v124
    %1146 = vmatpush.msra.mxu0 %v123
    %1147 = vmatpush.msra.mxu0 %v122
    %1148 = vmatmul.f32.gmra.mxu0 %v1130
    %v1149 = vpop.f32.mrf.mxu0
    %v1150 = vadd.f32 0.0, %v1149
    %1151 = vdwg.mxu0
    %v1152 = vadd.f32 %v239, %v1064
    %v1153 = vxor.u32 %v1152, 2147483648
    %v1154 = vmul.f32 %v1153, 1.442695
    %v1155 = vpow.pop %v1154
    %v1156 = vadd.f32 %v1155, 1.0
    %v1157 = vrcp.pop %v1156
    %v1158 = vmul.f32 %v1156, %v1157
    %v1159 = vsub.f32 1.0, %v1158
    %v1160 = vmul.f32 %v1157, %v1159
    %v1161 = vadd.f32 %v1157, %v1160
    %vm1162 = vweird.f32 %v1156
    %vm1163 = vweird.f32 %v1157
    %vm1164 = vmor %vm1162, %vm1163
    %v1165 = vsel %vm1164, %v1157, %v1161
    %v1166 = vand.u32 2147483647, %v1156
    %vm1167 = vcmp.eq.f32.partialorder %v1166, 8.507059e+37
    %v1168 = vand.u32 %v1156, 2147483648
    %v1169 = vor.u32 1.1754944e-38, %v1168
    %v1170 = vsel %vm1167, %v1169, %v1165
    %v1171 = vmul.f32 1.0, %v1170
    %v1172 = vtanh.pop %v1152
    %v1173 = vmul.f32 %v1171, %v1032
    %1175 = vrot.lane.b32.xlu0 %v1172, 64
    %v1176 = vpop.permute.xlu0 %1175
    %v1178 = vmul.f32 %v1171, %v1176
    %1180 = vrot.lane.b32.xlu0 %v1178, 32
    %v1181 = vpop.permute.xlu0 %1180
    %v1183 = vadd.f32 %v1173, %v1181
    %v1184 = vtanh.pop %v1183
    %1186 = vrot.lane.b32.xlu0 %v1184, 64
    %v1187 = vpop.permute.xlu0 %1186
    %v1189 = vmul.f32 %v1171, %v1187
    %1191 = vst [vmem:[#allocation1] ss:$4 sm:$0xff] %v1189
    %v1192 = vld.sshfl [vmem:[#allocation1] sm:$0xff pattern:$0x73625140]
    %1193 = vrot.lane.b32.xlu0 %v1192, 32
    %v1194 = vpop.permute.xlu0 %1193
    %v1195 = vsel %vm203, %v1194, 0
    %1197 = vmatpush.msra.mxu0 0.0
    %1198 = vmatpush.msra.mxu0 0.0
    %1199 = vmatpush.msra.mxu0 0.0
    %1200 = vmatpush.msra.mxu0 0.0
    %1201 = vmatpush.msra.mxu0 0.0
    %1202 = vmatpush.msra.mxu0 0.0
    %1203 = vmatpush.msra.mxu0 0.0
    %1204 = vmatpush.msra.mxu0 0.0
    %1205 = vmatpush.msra.mxu0 0.0
    %1206 = vmatpush.msra.mxu0 0.0
    %1207 = vmatpush.msra.mxu0 0.0
    %1208 = vmatpush.msra.mxu0 0.0
    %1209 = vmatpush.msra.mxu0 %v120
    %1210 = vmatpush.msra.mxu0 %v118
    %1211 = vmatpush.msra.mxu0 %v116
    %1212 = vmatpush.msra.mxu0 %v114
    %1213 = vmatmul.f32.gmra.mxu0 %v1195
    %v1214 = vpop.f32.mrf.mxu0
    %v1215 = vadd.f32 0.0, %v1214
    %1216 = vdwg.mxu0
    %1217 = vmatpush.msra.mxu0 0.0
    %1218 = vmatpush.msra.mxu0 0.0
    %1219 = vmatpush.msra.mxu0 0.0
    %1220 = vmatpush.msra.mxu0 0.0
    %1221 = vmatpush.msra.mxu0 0.0
    %1222 = vmatpush.msra.mxu0 0.0
    %1223 = vmatpush.msra.mxu0 0.0
    %1224 = vmatpush.msra.mxu0 0.0
    %1225 = vmatpush.msra.mxu0 0.0
    %1226 = vmatpush.msra.mxu0 0.0
    %1227 = vmatpush.msra.mxu0 0.0
    %1228 = vmatpush.msra.mxu0 0.0
    %1229 = vmatpush.msra.mxu0 %v121
    %1230 = vmatpush.msra.mxu0 %v119
    %1231 = vmatpush.msra.mxu0 %v117
    %1232 = vmatpush.msra.mxu0 %v115
    %1233 = vmatmul.f32.gmra.mxu0 %v1195
    %v1234 = vpop.f32.mrf.mxu0
    %v1235 = vadd.f32 0.0, %v1234
    %1236 = vdwg.mxu0
    %v1237 = vadd.f32 %v1235, %v1150
    %v1238 = vadd.f32 %v1237, %v131
    %v1239 = vxor.u32 %v1238, 2147483648
    %v1240 = vmul.f32 %v1239, 1.442695
    %v1241 = vpow.pop %v1240
    %v1242 = vadd.f32 %v1241, 1.0
    %v1243 = vrcp.pop %v1242
    %v1244 = vmul.f32 %v1242, %v1243
    %v1245 = vsub.f32 1.0, %v1244
    %v1246 = vmul.f32 %v1243, %v1245
    %v1247 = vadd.f32 %v1243, %v1246
    %vm1248 = vweird.f32 %v1242
    %vm1249 = vweird.f32 %v1243
    %vm1250 = vmor %vm1248, %vm1249
    %v1251 = vsel %vm1250, %v1243, %v1247
    %v1252 = vand.u32 2147483647, %v1242
    %vm1253 = vcmp.eq.f32.partialorder %v1252, 8.507059e+37
    %v1254 = vand.u32 %v1242, 2147483648
    %v1255 = vor.u32 1.1754944e-38, %v1254
    %v1256 = vsel %vm1253, %v1255, %v1251
    %v1257 = vmul.f32 1.0, %v1256
    %v1258 = vtanh.pop %v1238
    %v1259 = vmul.f32 %v1257, %v1118
    %1261 = vrot.lane.b32.xlu0 %v1258, 64
    %v1262 = vpop.permute.xlu0 %1261
    %v1264 = vmul.f32 %v1257, %v1262
    %1266 = vrot.lane.b32.xlu0 %v1264, 32
    %v1267 = vpop.permute.xlu0 %1266
    %v1269 = vadd.f32 %v1259, %v1267
    %v1270 = vtanh.pop %v1269
    %1272 = vrot.lane.b32.xlu0 %v1270, 64
    %v1273 = vpop.permute.xlu0 %1272
    %v1275 = vmul.f32 %v1257, %v1273
    %1277 = vrot.lane.b32.xlu0 %v1275, 32
    %v1278 = vpop.permute.xlu0 %1277
    %1280 = vst.msk [vmem:[#allocation2 + $0xc] sm:$0x3] %vm373, %v1278
    %v1281 = vsel %vm203, %v1278, 0
    %1283 = vmatpush.msra.mxu0 0.0
    %1284 = vmatpush.msra.mxu0 0.0
    %1285 = vmatpush.msra.mxu0 0.0
    %1286 = vmatpush.msra.mxu0 0.0
    %1287 = vmatpush.msra.mxu0 0.0
    %1288 = vmatpush.msra.mxu0 0.0
    %1289 = vmatpush.msra.mxu0 0.0
    %1290 = vmatpush.msra.mxu0 0.0
    %1291 = vmatpush.msra.mxu0 0.0
    %1292 = vmatpush.msra.mxu0 0.0
    %1293 = vmatpush.msra.mxu0 0.0
    %1294 = vmatpush.msra.mxu0 0.0
    %1295 = vmatpush.msra.mxu0 %v125
    %1296 = vmatpush.msra.mxu0 %v124
    %1297 = vmatpush.msra.mxu0 %v123
    %1298 = vmatpush.msra.mxu0 %v122
    %1299 = vmatmul.f32.gmra.mxu0 %v1281
    %v1300 = vpop.f32.mrf.mxu0
    %v1301 = vadd.f32 0.0, %v1300
    %1302 = vdwg.mxu0
    %v1303 = vadd.f32 %v240, %v1215
    %v1304 = vxor.u32 %v1303, 2147483648
    %v1305 = vmul.f32 %v1304, 1.442695
    %v1306 = vpow.pop %v1305
    %v1307 = vadd.f32 %v1306, 1.0
    %v1308 = vrcp.pop %v1307
    %v1309 = vmul.f32 %v1307, %v1308
    %v1310 = vsub.f32 1.0, %v1309
    %v1311 = vmul.f32 %v1308, %v1310
    %v1312 = vadd.f32 %v1308, %v1311
    %vm1313 = vweird.f32 %v1307
    %vm1314 = vweird.f32 %v1308
    %vm1315 = vmor %vm1313, %vm1314
    %v1316 = vsel %vm1315, %v1308, %v1312
    %v1317 = vand.u32 2147483647, %v1307
    %vm1318 = vcmp.eq.f32.partialorder %v1317, 8.507059e+37
    %v1319 = vand.u32 %v1307, 2147483648
    %v1320 = vor.u32 1.1754944e-38, %v1319
    %v1321 = vsel %vm1318, %v1320, %v1316
    %v1322 = vmul.f32 1.0, %v1321
    %v1323 = vtanh.pop %v1303
    %v1324 = vmul.f32 %v1322, %v1183
    %1326 = vrot.lane.b32.xlu0 %v1323, 64
    %v1327 = vpop.permute.xlu0 %1326
    %v1329 = vmul.f32 %v1322, %v1327
    %1331 = vrot.lane.b32.xlu0 %v1329, 32
    %v1332 = vpop.permute.xlu0 %1331
    %v1334 = vadd.f32 %v1324, %v1332
    %v1335 = vtanh.pop %v1334
    %1337 = vrot.lane.b32.xlu0 %v1335, 64
    %v1338 = vpop.permute.xlu0 %1337
    %v1340 = vmul.f32 %v1322, %v1338
    %1342 = vst [vmem:[#allocation1] ss:$4 sm:$0xff] %v1340
    %v1343 = vld.sshfl [vmem:[#allocation1] sm:$0xff pattern:$0x73625140]
    %1344 = vrot.lane.b32.xlu0 %v1343, 32
    %v1345 = vpop.permute.xlu0 %1344
    %v1346 = vsel %vm203, %v1345, 0
    %1348 = vmatpush.msra.mxu0 0.0
    %1349 = vmatpush.msra.mxu0 0.0
    %1350 = vmatpush.msra.mxu0 0.0
    %1351 = vmatpush.msra.mxu0 0.0
    %1352 = vmatpush.msra.mxu0 0.0
    %1353 = vmatpush.msra.mxu0 0.0
    %1354 = vmatpush.msra.mxu0 0.0
    %1355 = vmatpush.msra.mxu0 0.0
    %1356 = vmatpush.msra.mxu0 0.0
    %1357 = vmatpush.msra.mxu0 0.0
    %1358 = vmatpush.msra.mxu0 0.0
    %1359 = vmatpush.msra.mxu0 0.0
    %1360 = vmatpush.msra.mxu0 %v121
    %1361 = vmatpush.msra.mxu0 %v119
    %1362 = vmatpush.msra.mxu0 %v117
    %1363 = vmatpush.msra.mxu0 %v115
    %1364 = vmatmul.f32.gmra.mxu0 %v1346
    %v1365 = vpop.f32.mrf.mxu0
    %v1366 = vadd.f32 0.0, %v1365
    %1367 = vdwg.mxu0
    %v1368 = vadd.f32 %v1366, %v1301
    %v1369 = vadd.f32 %v1368, %v131
    %v1370 = vxor.u32 %v1369, 2147483648
    %v1371 = vmul.f32 %v1370, 1.442695
    %v1372 = vpow.pop %v1371
    %v1373 = vadd.f32 %v1372, 1.0
    %v1374 = vrcp.pop %v1373
    %v1375 = vmul.f32 %v1373, %v1374
    %v1376 = vsub.f32 1.0, %v1375
    %v1377 = vmul.f32 %v1374, %v1376
    %v1378 = vadd.f32 %v1374, %v1377
    %vm1379 = vweird.f32 %v1373
    %vm1380 = vweird.f32 %v1374
    %vm1381 = vmor %vm1379, %vm1380
    %v1382 = vsel %vm1381, %v1374, %v1378
    %v1383 = vand.u32 2147483647, %v1373
    %vm1384 = vcmp.eq.f32.partialorder %v1383, 8.507059e+37
    %v1385 = vand.u32 %v1373, 2147483648
    %v1386 = vor.u32 1.1754944e-38, %v1385
    %v1387 = vsel %vm1384, %v1386, %v1382
    %v1388 = vmul.f32 1.0, %v1387
    %v1389 = vtanh.pop %v1369
    %v1390 = vmul.f32 %v1388, %v1269
    %1392 = vrot.lane.b32.xlu0 %v1389, 64
    %v1393 = vpop.permute.xlu0 %1392
    %v1395 = vmul.f32 %v1388, %v1393
    %1397 = vrot.lane.b32.xlu0 %v1395, 32
    %v1398 = vpop.permute.xlu0 %1397
    %v1400 = vadd.f32 %v1390, %v1398
    %v1401 = vtanh.pop %v1400
    %1403 = vrot.lane.b32.xlu0 %v1401, 64
    %v1404 = vpop.permute.xlu0 %1403
    %v1406 = vmul.f32 %v1388, %v1404
    %1408 = vrot.lane.b32.xlu0 %v1406, 32
    %v1409 = vpop.permute.xlu0 %1408
    %1411 = vst.msk [vmem:[#allocation2 + $0xe] sm:$0x3] %vm373, %v1409
    %v1412 = vld [vmem:[#allocation2] sm:$0xff]
    %v1413 = vld [vmem:[#allocation2 + $0x8] sm:$0xff]
    %v1414 = vperm.slane %v130, 3
    %v1416 = vsel %vm203, %v1412, 0
    %v1419 = vsel %vm203, %v1413, 0
    %1421 = vmatpush.msra.mxu0 0.0
    %1422 = vmatpush.msra.mxu0 0.0
    %1423 = vmatpush.msra.mxu0 0.0
    %1424 = vmatpush.msra.mxu0 0.0
    %1425 = vmatpush.msra.mxu0 0.0
    %1426 = vmatpush.msra.mxu0 0.0
    %1427 = vmatpush.msra.mxu0 0.0
    %1428 = vmatpush.msra.mxu0 0.0
    %1429 = vmatpush.msra.mxu0 0.0
    %1430 = vmatpush.msra.mxu0 0.0
    %1431 = vmatpush.msra.mxu0 0.0
    %1432 = vmatpush.msra.mxu0 0.0
    %1433 = vmatpush.msra.mxu0 %v129
    %1434 = vmatpush.msra.mxu0 %v128
    %1435 = vmatpush.msra.mxu0 %v127
    %1436 = vmatpush.msra.mxu0 %v126
    %1437 = vmatmul.f32.gmra.mxu0 %v1416
    %v1438 = vpop.f32.mrf.mxu0
    %v1439 = vadd.f32 %v1414, %v1438
    %1440 = vmatmul.f32.gmra.mxu0 %v1419
    %v1441 = vpop.f32.mrf.mxu0
    %v1442 = vadd.f32 %v1414, %v1441
    %1443 = vdwg.mxu0
    %v1446 = vrot.slane %v1439, 2
    %v1447 = vrot.slane %v1439, 4
    %v1448 = vrot.slane %v1439, 6
    %v1449 = vrot.slane %v1442, 2
    %v1450 = vrot.slane %v1442, 4
    %v1451 = vrot.slane %v1442, 6
    %v1458 = vmul.f32 %v1439, %v108
    %v1459 = vmul.f32 %v1446, %v108
    %v1460 = vmul.f32 %v1447, %v108
    %v1461 = vmul.f32 %v1448, %v108
    %v1462 = vmul.f32 %v1442, %v108
    %v1463 = vmul.f32 %v1449, %v108
    %v1464 = vmul.f32 %v1450, %v108
    %v1465 = vmul.f32 %v1451, %v108
    %v1466 = vadd.f32 %v1458, %v58
    %v1467 = vadd.f32 %v1459, %v58
    %v1468 = vadd.f32 %v1460, %v58
    %v1469 = vadd.f32 %v1461, %v58
    %v1470 = vadd.f32 %v1462, %v58
    %v1471 = vadd.f32 %v1463, %v58
    %v1472 = vadd.f32 %v1464, %v58
    %v1473 = vadd.f32 %v1465, %v58
    %1474 = vst.msk [vmem:[%s2] sm:$0x3] %vm35, %v1466
    %1475 = vst.msk [vmem:[%s2 + $0x2] sm:$0x3] %vm35, %v1467
    %1476 = vst.msk [vmem:[%s2 + $0x4] sm:$0x3] %vm35, %v1468
    %1477 = vst.msk [vmem:[%s2 + $0x6] sm:$0x3] %vm35, %v1469
    %1478 = vst.msk [vmem:[%s2 + $0x8] sm:$0x3] %vm35, %v1470
    %1479 = vst.msk [vmem:[%s2 + $0xa] sm:$0x3] %vm35, %v1471
    %1480 = vst.msk [vmem:[%s2 + $0xc] sm:$0x3] %vm35, %v1472
    %1481 = vst.msk [vmem:[%s2 + $0xe] sm:$0x3] %vm35, %v1473
    // Predicated region
    $region14: #{imu_gps_forward.1} parent=1 // pred_check
      _
    $region15: #{imu_gps_forward.1} parent=1 // pred_check_branch
      %1483 = sbr.rel (0) target = $region17
    $region16: #{imu_gps_forward.1} parent=1 // pred_region
      _
    $region17: #{imu_gps_forward.1} parent=1 // pred_fallthru
      _
    // Predicated region
    $region18: #{imu_gps_forward.1} parent=1 // pred_check
      _
    $region19: #{imu_gps_forward.1} parent=1 // pred_check_branch
      %1485 = sbr.rel (0) target = $region21
    $region20: #{imu_gps_forward.1} parent=1 // pred_region
      _
    $region21: #{imu_gps_forward.1} parent=1 // pred_fallthru
      _
    %1486 = vsyncpa [#allocation4], 1

</llo_original>
